<compile_context>
chip_gen: v7x
topology: tpu7x:2x2x1
jax: 0.10.0
libtpu: 0.0.40
codegen_flags: <defaults>
</compile_context>

<pallas_src>
import functools

import jax
import jax.numpy as jnp
from jax import lax
from jax.experimental import pallas as pl
from jax.experimental.pallas import tpu as pltpu


def _round_up(x, m):
    return (x + m - 1) // m * m


def _skipblock_kernel(xp_ref, w1_ref, w2_ref, b2_ref, w3t_ref, b3t_ref, *rest,
                      nb, s, so, sp, sp_pad, k, stride, identity):
    """SkipBlock core for one batch-block of `nb` images (BN scales pre-folded).

    xp_ref  : (nb*sp*sp_pad, Cin+1) bf16  zero-padded pooled input + mask channel
    w1_ref  : (Cin+1, Hd)           bf16  [w1*bn1_scale ; bn1_bias]
    w2_ref  : (k, k, Hd, Hd)        bf16  kxk conv weights (HWIO) * bn2 scale
    b2_ref  : (1, Hd)               f32   folded bn2 bias
    w3t_ref : (Cout, Hd)            bf16  transposed 1x1 conv weights * bn3 scale
    b3t_ref : (Cout, 1)             f32   folded bn3 bias (column)
    res_ref : (Cout, nb*s*s)        bf16  pooled input, channels-first (identity only)
    o_ref   : (Cout, nb*so*so)      bf16  output, channels-first (lane-dense last dim)
    h1_ref  : VMEM scratch (nb, sp, sp_pad, Hd) bf16 — padded conv1 activations
    """
    if identity:
        res_ref, o_ref, h1_ref = rest
    else:
        o_ref, h1_ref = rest

    hd = w1_ref.shape[1]
    mo = nb * so * so

    # --- 1x1 conv (bn1 scale folded into w1; bn1 bias rides on the mask
    #     channel so halo rows stay exactly zero), then ReLU.
    #     bf16 MXU operands, f32 accumulation, f32 VPU for the ReLU.
    x = xp_ref[...]                                              # (nb*sp*sp_pad, Cin+1)
    h1 = jnp.dot(x, w1_ref[...], preferred_element_type=jnp.float32)
    h1 = jnp.maximum(h1, 0.0)
    # Single full, tile-aligned bf16 scratch store (sp_pad is sublane-aligned).
    h1_ref[...] = h1.reshape(nb, sp, sp_pad, hd).astype(h1_ref.dtype)

    # --- kxk conv. One aligned band load per ki (each h1 element read k times,
    #     not k*k); kj shifts are value-level slices (XLU), not extra VMEM
    #     traffic. For stride 2 the subsample happens BEFORE the matmul, so the
    #     MXU only computes outputs that are kept. f32 accumulation; the bn2
    #     bias pre-loads the accumulator.
    acc = jnp.broadcast_to(b2_ref[...], (mo, hd))                # (mo, Hd) f32
    for ki in range(k):
        band = h1_ref[:, ki:ki + stride * so, :, :]              # (nb, stride*so, sp_pad, Hd)
        if stride > 1:
            # Keep every stride-th row: leading-dim split + select (cheap).
            band = band.reshape(nb, so, stride, sp_pad, hd)[:, :, 0]
        for kj in range(k):
            cols = band[:, :, kj:kj + stride * so, :]            # (nb, so, stride*so, Hd)
            if stride > 1:
                cols = cols.reshape(nb, so, so, stride, hd)[:, :, :, 0, :]
            patch = cols.reshape(mo, hd)                         # bf16
            acc = acc + jnp.dot(patch, w2_ref[ki, kj],
                                preferred_element_type=jnp.float32)
    h2 = jnp.maximum(acc, 0.0)                                   # (mo, Hd) f32

    # --- final 1x1 conv (bn3 folded), computed transposed so the output slab
    #     is lane-dense: (Cout, Hd) x (mo, Hd)^T -> (Cout, mo). bf16 MXU.
    h3t = lax.dot_general(w3t_ref[...], h2.astype(w3t_ref.dtype),
                          (((1,), (1,)), ((), ())),
                          preferred_element_type=jnp.float32)
    h3t = h3t + b3t_ref[...]                                     # (Cout, mo) f32
    if identity:                                                 # stride==1, Cin==Cout
        h3t = h3t + res_ref[...].astype(jnp.float32)
    o_ref[...] = h3t.astype(o_ref.dtype)


def _adaptive_pool_matrix(in_size, out_size):
    """Row-stochastic averaging matrix matching torch adaptive_avg_pool bins."""
    rows = []
    for i in range(out_size):
        start = (i * in_size) // out_size
        end = -(-((i + 1) * in_size) // out_size)     # ceil((i+1)*in/out)
        rows.append([1.0 / (end - start) if start <= h < end else 0.0
                     for h in range(in_size)])
    return jnp.array(rows, jnp.float32)


def _pick_batch_block(n, so, per_image_bytes, budget_bytes):
    """Pick a batch block: fit VMEM budget, prefer lane-dense output (>=128
    lanes) AND >=2 grid steps (both v7x TensorCores busy); fall back in order."""
    divisors = [d for d in range(1, n + 1) if n % d == 0]
    fits = [d for d in divisors if d * per_image_bytes <= budget_bytes] or [1]
    lane_ok = [d for d in fits if d * so * so >= 128]
    multi_step = [d for d in lane_ok if (n // d) >= 2]
    if multi_step:
        return min(multi_step)
    if lane_ok:
        return min(lane_ok)
    return max(fits)


class SkipBlockPallas:
    # Conservative per-block VMEM budget (fits v7x's 64 MiB/TC with headroom
    # for double-buffered blocks + scratch + live f32 intermediates).
    _VMEM_BUDGET = 40 * 1024 * 1024

    def __init__(self, inp, hidden_dim, out, kernel_size, stride, size, key):
        assert stride in (1, 2)
        # TODO(synk): even kernel sizes (asymmetric torch padding) unsupported.
        assert kernel_size % 2 == 1
        self.size = size
        self.stride = stride
        self.kernel_size = kernel_size
        self.identity = (stride == 1 and inp == out)

        ks = jax.random.split(key, 16)
        # Conv weights generated in PyTorch (O, I, kh, kw) layout, then transposed.
        w1 = 0.1 * jax.random.normal(ks[0], (hidden_dim, inp, 1, 1), jnp.float32)
        w2 = 0.1 * jax.random.normal(
            ks[1], (hidden_dim, hidden_dim, kernel_size, kernel_size), jnp.float32)
        w3 = 0.1 * jax.random.normal(ks[2], (out, hidden_dim, 1, 1), jnp.float32)
        self.w1 = jnp.transpose(w1[:, :, 0, 0])            # (inp, hidden)
        self.w2 = jnp.transpose(w2, (2, 3, 1, 0))          # (kh, kw, in, out)  HWIO
        self.w3 = jnp.transpose(w3[:, :, 0, 0])            # (hidden, out)

        def bn(kg, kb, km, kv, c):
            gamma = 1.0 + 0.1 * jax.random.normal(kg, (c,), jnp.float32)
            beta = 0.1 * jax.random.normal(kb, (c,), jnp.float32)
            mean = 0.1 * jax.random.normal(km, (c,), jnp.float32)
            var = 1.0 + 0.1 * jnp.abs(jax.random.normal(kv, (c,), jnp.float32))
            scale = gamma / jnp.sqrt(var + 1e-5)
            bias = beta - mean * scale
            return scale.reshape(1, c), bias.reshape(1, c)

        self.s1, self.b1 = bn(ks[3], ks[4], ks[5], ks[6], hidden_dim)
        self.s2, self.b2 = bn(ks[7], ks[8], ks[9], ks[10], hidden_dim)
        self.s3, self.b3 = bn(ks[11], ks[12], ks[13], ks[14], out)

        # Fold BN scales into the conv weights; MXU operands in bf16, biases
        # that are added on the f32 VPU path stay f32.
        w1_aug = jnp.concatenate([self.w1 * self.s1, self.b1], axis=0)  # (inp+1, hidden)
        self.w1f = w1_aug.astype(jnp.bfloat16)
        self.w2f = (self.w2 * self.s2[0]).astype(jnp.bfloat16)          # (k,k,hd,hd)
        self.b2f = self.b2                                              # (1, hidden) f32
        self.w3tf = jnp.transpose(self.w3 * self.s3).astype(jnp.bfloat16)  # (out, hidden)
        self.b3tf = jnp.transpose(self.b3)                              # (out, 1) f32

    @staticmethod
    def _per_image_vmem_bytes(c, hd, cout, s, sp, sp_pad, so):
        bf, f4 = 2, 4
        xp_blk = sp * sp_pad * (c + 1) * bf * 2        # double-buffered input block
        res_blk = cout * s * s * bf * 2                # residual block (identity)
        out_blk = cout * so * so * bf * 2              # double-buffered output block
        h1_scr = sp * sp_pad * hd * bf                 # bf16 scratch
        live = (sp * sp_pad * hd + 2 * so * so * hd + cout * so * so) * f4
        return xp_blk + res_blk + out_blk + h1_scr + live

    def __call__(self, x_nchw):
        n, c, h, w = x_nchw.shape
        s = self.size
        k = self.kernel_size
        p = (k - 1) // 2
        sp = s + 2 * p
        so = (s + 2 * p - k) // self.stride + 1
        hd = self.w1.shape[1]
        cout = self.w3.shape[1]
        if self.stride == 2:
            # TODO(synk): odd pooled sizes with stride 2 need one extra pad row/col.
            assert s % 2 == 0

        # bf16 scratch -> sublane pack of 16: pad the haloed column count so the
        # scratch store and per-ki band loads stay tile-aligned (rows are a
        # leading dim of the scratch and need no padding).
        sp_pad = _round_up(sp, 16)

        # adaptive_avg_pool2d(x, size) directly from NCHW (two small averaging
        # matmuls; no full-resolution NHWC transpose is materialized).
        ph = _adaptive_pool_matrix(h, s)
        pw = _adaptive_pool_matrix(w, s)
        xp = jnp.einsum('ih,jw,nchw->nijc', ph, pw,
                        x_nchw.astype(jnp.float32))             # (N, S, S, C)

        per_img = self._per_image_vmem_bytes(c, hd, cout, s, sp, sp_pad, so)
        nb = _pick_batch_block(n, so, per_img, self._VMEM_BUDGET)
        nblk = n // nb

        # Interior mask as an extra input channel: carries the bn1 bias through
        # the MXU and keeps the zero-padded halo exactly zero after ReLU.
        ones = jnp.ones((n, s, s, 1), jnp.float32)
        x_aug = jnp.concatenate([xp, ones], axis=-1)            # (N, S, S, C+1)
        xp_pad = jnp.pad(x_aug, ((0, 0), (p, p), (p, sp_pad - s - p), (0, 0)))
        xp_pad = xp_pad.reshape(nblk, nb * sp * sp_pad, c + 1).astype(jnp.bfloat16)

        inputs = [xp_pad, self.w1f, self.w2f, self.b2f, self.w3tf, self.b3tf]
        in_specs = [
            pl.BlockSpec((None, nb * sp * sp_pad, c + 1), lambda b: (b, 0, 0)),
            pl.BlockSpec((c + 1, hd), lambda b: (0, 0)),
            pl.BlockSpec((k, k, hd, hd), lambda b: (0, 0, 0, 0)),
            pl.BlockSpec((1, hd), lambda b: (0, 0)),
            pl.BlockSpec((cout, hd), lambda b: (0, 0)),
            pl.BlockSpec((cout, 1), lambda b: (0, 0)),
        ]
        if self.identity:
            # Pooled input, channels-first per block, bf16, for the in-kernel residual.
            res = jnp.transpose(xp, (0, 3, 1, 2)).reshape(nblk, nb, c, s * s)
            res = jnp.transpose(res, (0, 2, 1, 3)).reshape(nblk, c, nb * s * s)
            inputs.append(res.astype(jnp.bfloat16))
            in_specs.append(
                pl.BlockSpec((None, c, nb * s * s), lambda b: (b, 0, 0)))

        kernel = functools.partial(_skipblock_kernel, nb=nb, s=s, so=so, sp=sp,
                                   sp_pad=sp_pad, k=k, stride=self.stride,
                                   identity=self.identity)

        mo = nb * so * so
        m1 = nb * sp * sp_pad
        flops = nblk * (2 * m1 * (c + 1) * hd
                        + 2 * k * k * mo * hd * hd
                        + 2 * mo * hd * cout
                        + (cout * mo if self.identity else 0))
        bytes_accessed = (sum(int(a.size) * a.dtype.itemsize for a in inputs)
                          + nblk * cout * mo * 2)
        cost = pl.CostEstimate(flops=int(flops), transcendentals=0,
                               bytes_accessed=int(bytes_accessed))

        # Explicit VMEM budget (BlockSpec double-buffers every grid-varying
        # block); floor at 32 MiB (> v5e's 16 MiB scoped default), cap at the
        # 64 MiB v7x physical VMEM per TensorCore.
        weight_bytes = sum(int(a.size) * a.dtype.itemsize for a in inputs[1:6])
        est = nb * per_img + 2 * weight_bytes
        vmem_limit = int(min(64 * 1024 * 1024,
                             max(32 * 1024 * 1024, 2 * est + (8 << 20))))

        out = pl.pallas_call(
            kernel,
            out_shape=jax.ShapeDtypeStruct((nblk, cout, mo), jnp.bfloat16),
            grid=(nblk,),
            in_specs=in_specs,
            out_specs=pl.BlockSpec((None, cout, mo), lambda b: (b, 0, 0)),
            scratch_shapes=[pltpu.VMEM((nb, sp, sp_pad, hd), jnp.bfloat16)],
            compiler_params=pltpu.CompilerParams(
                dimension_semantics=("parallel",),
                vmem_limit_bytes=vmem_limit),
            cost_estimate=cost,
        )(*inputs)

        # (NBLK, Cout, NB*So*So) bf16 -> NCHW f32 (cast fuses into the transpose).
        out = out.reshape(nblk, cout, nb, so, so).astype(jnp.float32)
        return jnp.transpose(out, (0, 2, 1, 3, 4)).reshape(n, cout, so, so)


def _reference(block, x_nchw):
    """Pure-JAX f32 reference (lax convs, unfolded BN) for verification."""
    n, c, h, w = x_nchw.shape
    s = block.size
    ph = _adaptive_pool_matrix(h, s)
    pw = _adaptive_pool_matrix(w, s)
    xp = jnp.einsum('ih,jw,nchw->nijc', ph, pw, x_nchw.astype(jnp.float32))
    dn = ('NHWC', 'HWIO', 'NHWC')
    y = lax.conv_general_dilated(xp, block.w1.reshape(1, 1, *block.w1.shape),
                                 (1, 1), 'VALID', dimension_numbers=dn)
    y = jnp.maximum(y * block.s1[0] + block.b1[0], 0.0)
    p = (block.kernel_size - 1) // 2
    y = lax.conv_general_dilated(y, block.w2, (block.stride, block.stride),
                                 [(p, p), (p, p)], dimension_numbers=dn)
    y = jnp.maximum(y * block.s2[0] + block.b2[0], 0.0)
    y = lax.conv_general_dilated(y, block.w3.reshape(1, 1, *block.w3.shape),
                                 (1, 1), 'VALID', dimension_numbers=dn)
    y = y * block.s3[0] + block.b3[0]
    if block.identity:
        y = y + xp
    return jnp.transpose(y, (0, 3, 1, 2))


if __name__ == "__main__":
    key = jax.random.PRNGKey(0)
    kparam, kx = jax.random.split(key)

    # inp=4, hidden_dim=8, out=4, kernel_size=3, stride=1, size=8 -> identity path
    block = SkipBlockPallas(inp=4, hidden_dim=8, out=4, kernel_size=3,
                            stride=1, size=8, key=kparam)
    x = jax.random.normal(kx, (2, 4, 16, 16), jnp.float32)   # NCHW, like PyTorch

    y = jax.block_until_ready(block(x))
    assert y.shape == (2, 4, 8, 8), y.shape

    y_ref = _reference(block, x)
    max_err = float(jnp.max(jnp.abs(y - y_ref)))
    # bf16 MXU operands / bf16 activations vs. the pure-f32 reference.
    assert jnp.allclose(y, y_ref, atol=5e-2, rtol=5e-2), max_err

    print("KERNEL_OK")
</pallas_src>

<mosaic_0001>
module attributes {stable_mosaic.version = 11 : i64} {
  func.func @_skipblock_kernel(%arg0: i32, %arg1: memref<1x320x5xbf16, #tpu.memory_space<vmem>>, %arg2: memref<5x8xbf16, #tpu.memory_space<vmem>>, %arg3: memref<3x3x8x8xbf16, #tpu.memory_space<vmem>>, %arg4: memref<1x8xf32, #tpu.memory_space<vmem>>, %arg5: memref<4x8xbf16, #tpu.memory_space<vmem>>, %arg6: memref<4x1xf32, #tpu.memory_space<vmem>>, %arg7: memref<1x4x128xbf16, #tpu.memory_space<vmem>>, %arg8: memref<1x4x128xbf16, #tpu.memory_space<vmem>>, %arg9: memref<2x10x16x8xbf16, #tpu.memory_space<vmem>>) attributes {dimension_semantics = [#tpu.dimension_semantics<parallel>], iteration_bounds = array<i64: 1>, scalar_prefetch = 0 : i64, scratch_operands = 1 : i64, tpu.core_type = #tpu.core_type<tc>, window_params = [{transform_indices = @transform_0, window_bounds = array<i64: 1, 320, 5>}, {pipeline_mode = #tpu.pipeline_mode<synchronous>, transform_indices = @transform_1, window_bounds = array<i64: 5, 8>}, {pipeline_mode = #tpu.pipeline_mode<synchronous>, transform_indices = @transform_2, window_bounds = array<i64: 3, 3, 8, 8>}, {pipeline_mode = #tpu.pipeline_mode<synchronous>, transform_indices = @transform_3, window_bounds = array<i64: 1, 8>}, {pipeline_mode = #tpu.pipeline_mode<synchronous>, transform_indices = @transform_4, window_bounds = array<i64: 4, 8>}, {pipeline_mode = #tpu.pipeline_mode<synchronous>, transform_indices = @transform_5, window_bounds = array<i64: 4, 1>}, {transform_indices = @transform_6, window_bounds = array<i64: 1, 4, 128>}, {transform_indices = @transform_7, window_bounds = array<i64: 1, 4, 128>}]} {
    %c0 = arith.constant 0 : index
    %c0_0 = arith.constant 0 : index
    %c0_1 = arith.constant 0 : index
    %0 = vector.load %arg1[%c0, %c0_0, %c0_1] : memref<1x320x5xbf16, #tpu.memory_space<vmem>>, vector<1x320x5xbf16>
    %1 = vector.shape_cast %0 : vector<1x320x5xbf16> to vector<320x5xbf16>
    %c0_2 = arith.constant 0 : index
    %c0_3 = arith.constant 0 : index
    %2 = vector.load %arg2[%c0_2, %c0_3] : memref<5x8xbf16, #tpu.memory_space<vmem>>, vector<5x8xbf16>
    %cst = arith.constant dense<0.000000e+00> : vector<320x8xf32>
    %3 = tpu.matmul %1, %2, %cst {dimension_numbers = #tpu.dot_dimension_numbers<[1], [0], [0], [1], [0, 0, 1, 1], [], []>} : vector<320x5xbf16>, vector<5x8xbf16>, vector<320x8xf32> -> vector<320x8xf32>
    %cst_4 = arith.constant 0.000000e+00 : f32
    %4 = vector.broadcast %cst_4 : f32 to vector<320x8xf32>
    %5 = arith.maximumf %3, %4 : vector<320x8xf32>
    %6 = vector.shape_cast %5 : vector<320x8xf32> to vector<2x10x16x8xf32>
    %7 = arith.truncf %6 : vector<2x10x16x8xf32> to vector<2x10x16x8xbf16>
    %c0_5 = arith.constant 0 : index
    %c0_6 = arith.constant 0 : index
    %c0_7 = arith.constant 0 : index
    %c0_8 = arith.constant 0 : index
    %8 = vector.load %arg9[%c0_5, %c0_6, %c0_7, %c0_8] : memref<2x10x16x8xbf16, #tpu.memory_space<vmem>>, vector<2x10x16x8xbf16>
    tpu.vector_store %arg9[%c0_5, %c0_6, %c0_7, %c0_8], %7 {strides = array<i32>} : memref<2x10x16x8xbf16, #tpu.memory_space<vmem>>, vector<2x10x16x8xbf16>,
    %c0_9 = arith.constant 0 : index
    %c0_10 = arith.constant 0 : index
    %9 = vector.load %arg4[%c0_9, %c0_10] : memref<1x8xf32, #tpu.memory_space<vmem>>, vector<1x8xf32>
    %10 = vector.shape_cast %9 : vector<1x8xf32> to vector<1x8xf32>
    %11 = vector.broadcast %10 : vector<1x8xf32> to vector<128x8xf32>
    %c0_11 = arith.constant 0 : index
    %c0_12 = arith.constant 0 : index
    %c0_13 = arith.constant 0 : index
    %c0_14 = arith.constant 0 : index
    %12 = vector.load %arg9[%c0_11, %c0_12, %c0_13, %c0_14] : memref<2x10x16x8xbf16, #tpu.memory_space<vmem>>, vector<2x8x16x8xbf16>
    %13 = vector.extract_strided_slice %12 {offsets = [0, 0, 0, 0], sizes = [2, 8, 8, 8], strides = [1, 1, 1, 1]} : vector<2x8x16x8xbf16> to vector<2x8x8x8xbf16>
    %14 = vector.shape_cast %13 : vector<2x8x8x8xbf16> to vector<128x8xbf16>
    %c0_15 = arith.constant 0 : index
    %c0_16 = arith.constant 0 : index
    %c0_17 = arith.constant 0 : index
    %c0_18 = arith.constant 0 : index
    %15 = vector.load %arg3[%c0_15, %c0_16, %c0_17, %c0_18] : memref<3x3x8x8xbf16, #tpu.memory_space<vmem>>, vector<1x1x8x8xbf16>
    %16 = vector.shape_cast %15 : vector<1x1x8x8xbf16> to vector<8x8xbf16>
    %cst_19 = arith.constant dense<0.000000e+00> : vector<128x8xf32>
    %17 = tpu.matmul %14, %16, %cst_19 {dimension_numbers = #tpu.dot_dimension_numbers<[1], [0], [0], [1], [0, 0, 1, 1], [], []>} : vector<128x8xbf16>, vector<8x8xbf16>, vector<128x8xf32> -> vector<128x8xf32>
    %18 = arith.addf %11, %17 : vector<128x8xf32>
    %19 = vector.extract_strided_slice %12 {offsets = [0, 0, 1, 0], sizes = [2, 8, 8, 8], strides = [1, 1, 1, 1]} : vector<2x8x16x8xbf16> to vector<2x8x8x8xbf16>
    %20 = vector.shape_cast %19 : vector<2x8x8x8xbf16> to vector<128x8xbf16>
    %c0_20 = arith.constant 0 : index
    %c1 = arith.constant 1 : index
    %c0_21 = arith.constant 0 : index
    %c0_22 = arith.constant 0 : index
    %21 = vector.load %arg3[%c0_20, %c1, %c0_21, %c0_22] : memref<3x3x8x8xbf16, #tpu.memory_space<vmem>>, vector<1x1x8x8xbf16>
    %22 = vector.shape_cast %21 : vector<1x1x8x8xbf16> to vector<8x8xbf16>
    %cst_23 = arith.constant dense<0.000000e+00> : vector<128x8xf32>
    %23 = tpu.matmul %20, %22, %cst_23 {dimension_numbers = #tpu.dot_dimension_numbers<[1], [0], [0], [1], [0, 0, 1, 1], [], []>} : vector<128x8xbf16>, vector<8x8xbf16>, vector<128x8xf32> -> vector<128x8xf32>
    %24 = arith.addf %18, %23 : vector<128x8xf32>
    %25 = vector.extract_strided_slice %12 {offsets = [0, 0, 2, 0], sizes = [2, 8, 8, 8], strides = [1, 1, 1, 1]} : vector<2x8x16x8xbf16> to vector<2x8x8x8xbf16>
    %26 = vector.shape_cast %25 : vector<2x8x8x8xbf16> to vector<128x8xbf16>
    %c0_24 = arith.constant 0 : index
    %c2 = arith.constant 2 : index
    %c0_25 = arith.constant 0 : index
    %c0_26 = arith.constant 0 : index
    %27 = vector.load %arg3[%c0_24, %c2, %c0_25, %c0_26] : memref<3x3x8x8xbf16, #tpu.memory_space<vmem>>, vector<1x1x8x8xbf16>
    %28 = vector.shape_cast %27 : vector<1x1x8x8xbf16> to vector<8x8xbf16>
    %cst_27 = arith.constant dense<0.000000e+00> : vector<128x8xf32>
    %29 = tpu.matmul %26, %28, %cst_27 {dimension_numbers = #tpu.dot_dimension_numbers<[1], [0], [0], [1], [0, 0, 1, 1], [], []>} : vector<128x8xbf16>, vector<8x8xbf16>, vector<128x8xf32> -> vector<128x8xf32>
    %30 = arith.addf %24, %29 : vector<128x8xf32>
    %c0_28 = arith.constant 0 : index
    %c1_29 = arith.constant 1 : index
    %c0_30 = arith.constant 0 : index
    %c0_31 = arith.constant 0 : index
    %31 = vector.load %arg9[%c0_28, %c1_29, %c0_30, %c0_31] : memref<2x10x16x8xbf16, #tpu.memory_space<vmem>>, vector<2x8x16x8xbf16>
    %32 = vector.extract_strided_slice %31 {offsets = [0, 0, 0, 0], sizes = [2, 8, 8, 8], strides = [1, 1, 1, 1]} : vector<2x8x16x8xbf16> to vector<2x8x8x8xbf16>
    %33 = vector.shape_cast %32 : vector<2x8x8x8xbf16> to vector<128x8xbf16>
    %c1_32 = arith.constant 1 : index
    %c0_33 = arith.constant 0 : index
    %c0_34 = arith.constant 0 : index
    %c0_35 = arith.constant 0 : index
    %34 = vector.load %arg3[%c1_32, %c0_33, %c0_34, %c0_35] : memref<3x3x8x8xbf16, #tpu.memory_space<vmem>>, vector<1x1x8x8xbf16>
    %35 = vector.shape_cast %34 : vector<1x1x8x8xbf16> to vector<8x8xbf16>
    %cst_36 = arith.constant dense<0.000000e+00> : vector<128x8xf32>
    %36 = tpu.matmul %33, %35, %cst_36 {dimension_numbers = #tpu.dot_dimension_numbers<[1], [0], [0], [1], [0, 0, 1, 1], [], []>} : vector<128x8xbf16>, vector<8x8xbf16>, vector<128x8xf32> -> vector<128x8xf32>
    %37 = arith.addf %30, %36 : vector<128x8xf32>
    %38 = vector.extract_strided_slice %31 {offsets = [0, 0, 1, 0], sizes = [2, 8, 8, 8], strides = [1, 1, 1, 1]} : vector<2x8x16x8xbf16> to vector<2x8x8x8xbf16>
    %39 = vector.shape_cast %38 : vector<2x8x8x8xbf16> to vector<128x8xbf16>
    %c1_37 = arith.constant 1 : index
    %c1_38 = arith.constant 1 : index
    %c0_39 = arith.constant 0 : index
    %c0_40 = arith.constant 0 : index
    %40 = vector.load %arg3[%c1_37, %c1_38, %c0_39, %c0_40] : memref<3x3x8x8xbf16, #tpu.memory_space<vmem>>, vector<1x1x8x8xbf16>
    %41 = vector.shape_cast %40 : vector<1x1x8x8xbf16> to vector<8x8xbf16>
    %cst_41 = arith.constant dense<0.000000e+00> : vector<128x8xf32>
    %42 = tpu.matmul %39, %41, %cst_41 {dimension_numbers = #tpu.dot_dimension_numbers<[1], [0], [0], [1], [0, 0, 1, 1], [], []>} : vector<128x8xbf16>, vector<8x8xbf16>, vector<128x8xf32> -> vector<128x8xf32>
    %43 = arith.addf %37, %42 : vector<128x8xf32>
    %44 = vector.extract_strided_slice %31 {offsets = [0, 0, 2, 0], sizes = [2, 8, 8, 8], strides = [1, 1, 1, 1]} : vector<2x8x16x8xbf16> to vector<2x8x8x8xbf16>
    %45 = vector.shape_cast %44 : vector<2x8x8x8xbf16> to vector<128x8xbf16>
    %c1_42 = arith.constant 1 : index
    %c2_43 = arith.constant 2 : index
    %c0_44 = arith.constant 0 : index
    %c0_45 = arith.constant 0 : index
    %46 = vector.load %arg3[%c1_42, %c2_43, %c0_44, %c0_45] : memref<3x3x8x8xbf16, #tpu.memory_space<vmem>>, vector<1x1x8x8xbf16>
    %47 = vector.shape_cast %46 : vector<1x1x8x8xbf16> to vector<8x8xbf16>
    %cst_46 = arith.constant dense<0.000000e+00> : vector<128x8xf32>
    %48 = tpu.matmul %45, %47, %cst_46 {dimension_numbers = #tpu.dot_dimension_numbers<[1], [0], [0], [1], [0, 0, 1, 1], [], []>} : vector<128x8xbf16>, vector<8x8xbf16>, vector<128x8xf32> -> vector<128x8xf32>
    %49 = arith.addf %43, %48 : vector<128x8xf32>
    %c0_47 = arith.constant 0 : index
    %c2_48 = arith.constant 2 : index
    %c0_49 = arith.constant 0 : index
    %c0_50 = arith.constant 0 : index
    %50 = vector.load %arg9[%c0_47, %c2_48, %c0_49, %c0_50] : memref<2x10x16x8xbf16, #tpu.memory_space<vmem>>, vector<2x8x16x8xbf16>
    %51 = vector.extract_strided_slice %50 {offsets = [0, 0, 0, 0], sizes = [2, 8, 8, 8], strides = [1, 1, 1, 1]} : vector<2x8x16x8xbf16> to vector<2x8x8x8xbf16>
    %52 = vector.shape_cast %51 : vector<2x8x8x8xbf16> to vector<128x8xbf16>
    %c2_51 = arith.constant 2 : index
    %c0_52 = arith.constant 0 : index
    %c0_53 = arith.constant 0 : index
    %c0_54 = arith.constant 0 : index
    %53 = vector.load %arg3[%c2_51, %c0_52, %c0_53, %c0_54] : memref<3x3x8x8xbf16, #tpu.memory_space<vmem>>, vector<1x1x8x8xbf16>
    %54 = vector.shape_cast %53 : vector<1x1x8x8xbf16> to vector<8x8xbf16>
    %cst_55 = arith.constant dense<0.000000e+00> : vector<128x8xf32>
    %55 = tpu.matmul %52, %54, %cst_55 {dimension_numbers = #tpu.dot_dimension_numbers<[1], [0], [0], [1], [0, 0, 1, 1], [], []>} : vector<128x8xbf16>, vector<8x8xbf16>, vector<128x8xf32> -> vector<128x8xf32>
    %56 = arith.addf %49, %55 : vector<128x8xf32>
    %57 = vector.extract_strided_slice %50 {offsets = [0, 0, 1, 0], sizes = [2, 8, 8, 8], strides = [1, 1, 1, 1]} : vector<2x8x16x8xbf16> to vector<2x8x8x8xbf16>
    %58 = vector.shape_cast %57 : vector<2x8x8x8xbf16> to vector<128x8xbf16>
    %c2_56 = arith.constant 2 : index
    %c1_57 = arith.constant 1 : index
    %c0_58 = arith.constant 0 : index
    %c0_59 = arith.constant 0 : index
    %59 = vector.load %arg3[%c2_56, %c1_57, %c0_58, %c0_59] : memref<3x3x8x8xbf16, #tpu.memory_space<vmem>>, vector<1x1x8x8xbf16>
    %60 = vector.shape_cast %59 : vector<1x1x8x8xbf16> to vector<8x8xbf16>
    %cst_60 = arith.constant dense<0.000000e+00> : vector<128x8xf32>
    %61 = tpu.matmul %58, %60, %cst_60 {dimension_numbers = #tpu.dot_dimension_numbers<[1], [0], [0], [1], [0, 0, 1, 1], [], []>} : vector<128x8xbf16>, vector<8x8xbf16>, vector<128x8xf32> -> vector<128x8xf32>
    %62 = arith.addf %56, %61 : vector<128x8xf32>
    %63 = vector.extract_strided_slice %50 {offsets = [0, 0, 2, 0], sizes = [2, 8, 8, 8], strides = [1, 1, 1, 1]} : vector<2x8x16x8xbf16> to vector<2x8x8x8xbf16>
    %64 = vector.shape_cast %63 : vector<2x8x8x8xbf16> to vector<128x8xbf16>
    %c2_61 = arith.constant 2 : index
    %c2_62 = arith.constant 2 : index
    %c0_63 = arith.constant 0 : index
    %c0_64 = arith.constant 0 : index
    %65 = vector.load %arg3[%c2_61, %c2_62, %c0_63, %c0_64] : memref<3x3x8x8xbf16, #tpu.memory_space<vmem>>, vector<1x1x8x8xbf16>
    %66 = vector.shape_cast %65 : vector<1x1x8x8xbf16> to vector<8x8xbf16>
    %cst_65 = arith.constant dense<0.000000e+00> : vector<128x8xf32>
    %67 = tpu.matmul %64, %66, %cst_65 {dimension_numbers = #tpu.dot_dimension_numbers<[1], [0], [0], [1], [0, 0, 1, 1], [], []>} : vector<128x8xbf16>, vector<8x8xbf16>, vector<128x8xf32> -> vector<128x8xf32>
    %68 = arith.addf %62, %67 : vector<128x8xf32>
    %cst_66 = arith.constant 0.000000e+00 : f32
    %69 = vector.broadcast %cst_66 : f32 to vector<128x8xf32>
    %70 = arith.maximumf %68, %69 : vector<128x8xf32>
    %c0_67 = arith.constant 0 : index
    %c0_68 = arith.constant 0 : index
    %71 = vector.load %arg5[%c0_67, %c0_68] : memref<4x8xbf16, #tpu.memory_space<vmem>>, vector<4x8xbf16>
    %72 = arith.truncf %70 : vector<128x8xf32> to vector<128x8xbf16>
    %cst_69 = arith.constant dense<0.000000e+00> : vector<4x128xf32>
    %73 = tpu.matmul %71, %72, %cst_69 {dimension_numbers = #tpu.dot_dimension_numbers<[1], [1], [0], [0], [0, 0, 1, 0], [], []>} : vector<4x8xbf16>, vector<128x8xbf16>, vector<4x128xf32> -> vector<4x128xf32>
    %c0_70 = arith.constant 0 : index
    %c0_71 = arith.constant 0 : index
    %74 = vector.load %arg6[%c0_70, %c0_71] : memref<4x1xf32, #tpu.memory_space<vmem>>, vector<4x1xf32>
    %75 = vector.broadcast %74 : vector<4x1xf32> to vector<4x128xf32>
    %76 = arith.addf %73, %75 : vector<4x128xf32>
    %c0_72 = arith.constant 0 : index
    %c0_73 = arith.constant 0 : index
    %c0_74 = arith.constant 0 : index
    %77 = vector.load %arg7[%c0_72, %c0_73, %c0_74] : memref<1x4x128xbf16, #tpu.memory_space<vmem>>, vector<1x4x128xbf16>
    %78 = vector.shape_cast %77 : vector<1x4x128xbf16> to vector<4x128xbf16>
    %79 = arith.extf %78 : vector<4x128xbf16> to vector<4x128xf32>
    %80 = arith.addf %76, %79 : vector<4x128xf32>
    %81 = arith.truncf %80 : vector<4x128xf32> to vector<4x128xbf16>
    %c0_75 = arith.constant 0 : index
    %c0_76 = arith.constant 0 : index
    %c0_77 = arith.constant 0 : index
    %82 = vector.load %arg8[%c0_75, %c0_76, %c0_77] : memref<1x4x128xbf16, #tpu.memory_space<vmem>>, vector<1x4x128xbf16>
    %83 = vector.shape_cast %82 : vector<1x4x128xbf16> to vector<4x128xbf16>
    %84 = vector.shape_cast %81 : vector<4x128xbf16> to vector<1x4x128xbf16>
    tpu.vector_store %arg8[%c0_75, %c0_76, %c0_77], %84 {strides = array<i32>} : memref<1x4x128xbf16, #tpu.memory_space<vmem>>, vector<1x4x128xbf16>,
    return
  }
  func.func @transform_0(%arg0: i32) -> (i32, i32, i32) {
    %c0_i32 = arith.constant 0 : i32
    %c0_i32_0 = arith.constant 0 : i32
    %c0_i32_1 = arith.constant 0 : i32
    return %arg0, %c0_i32, %c0_i32_0 : i32, i32, i32
  }
  func.func @transform_1(%arg0: i32) -> (i32, i32) {
    %c0_i32 = arith.constant 0 : i32
    %c0_i32_0 = arith.constant 0 : i32
    %c0_i32_1 = arith.constant 0 : i32
    return %c0_i32, %c0_i32_0 : i32, i32
  }
  func.func @transform_2(%arg0: i32) -> (i32, i32, i32, i32) {
    %c0_i32 = arith.constant 0 : i32
    %c0_i32_0 = arith.constant 0 : i32
    %c0_i32_1 = arith.constant 0 : i32
    %c0_i32_2 = arith.constant 0 : i32
    %c0_i32_3 = arith.constant 0 : i32
    return %c0_i32, %c0_i32_0, %c0_i32_1, %c0_i32_2 : i32, i32, i32, i32
  }
  func.func @transform_3(%arg0: i32) -> (i32, i32) {
    %c0_i32 = arith.constant 0 : i32
    %c0_i32_0 = arith.constant 0 : i32
    %c0_i32_1 = arith.constant 0 : i32
    return %c0_i32, %c0_i32_0 : i32, i32
  }
  func.func @transform_4(%arg0: i32) -> (i32, i32) {
    %c0_i32 = arith.constant 0 : i32
    %c0_i32_0 = arith.constant 0 : i32
    %c0_i32_1 = arith.constant 0 : i32
    return %c0_i32, %c0_i32_0 : i32, i32
  }
  func.func @transform_5(%arg0: i32) -> (i32, i32) {
    %c0_i32 = arith.constant 0 : i32
    %c0_i32_0 = arith.constant 0 : i32
    %c0_i32_1 = arith.constant 0 : i32
    return %c0_i32, %c0_i32_0 : i32, i32
  }
  func.func @transform_6(%arg0: i32) -> (i32, i32, i32) {
    %c0_i32 = arith.constant 0 : i32
    %c0_i32_0 = arith.constant 0 : i32
    %c0_i32_1 = arith.constant 0 : i32
    return %arg0, %c0_i32, %c0_i32_0 : i32, i32, i32
  }
  func.func @transform_7(%arg0: i32) -> (i32, i32, i32) {
    %c0_i32 = arith.constant 0 : i32
    %c0_i32_0 = arith.constant 0 : i32
    %c0_i32_1 = arith.constant 0 : i32
    return %arg0, %c0_i32, %c0_i32_0 : i32, i32, i32
  }
}

</mosaic_0001>

<llo_original>
// kernel: tpu_custom_call.1
$region0: #{tpu_custom_call.1}
  #allocation0 [shape = 'u32[]', space=smem, size = 0x4, offset = 0x4, fixed_abs, tag = 'smem constant byte address 0x4 - core index']
  #allocation1 [shape = 'u32[144,128]{1,0:T(1,128)}', space=vmem, size = 0x12000, scoped, tag = 'internal scratch']
  #allocation2 [shape = 'bf16[2,10,16,8]{3,2,1,0:T(16,128)(2,1)}', space=vmem, size = 0x14000, scoped, tag = 'scratch operand']
  %s0 = inlined_call_operand.vmem [shape: bf16[1,320,5], index: 0, kind: input, shape index: {}]
  %s1 = inlined_call_operand.vmem [shape: bf16[5,8], index: 1, kind: input, shape index: {}]
  %s2 = inlined_call_operand.vmem [shape: bf16[3,3,8,8], index: 2, kind: input, shape index: {}]
  %s3 = inlined_call_operand.vmem [shape: f32[1,8], index: 3, kind: input, shape index: {}]
  %s4 = inlined_call_operand.vmem [shape: bf16[4,8], index: 4, kind: input, shape index: {}]
  %s5 = inlined_call_operand.vmem [shape: f32[4,1], index: 5, kind: input, shape index: {}]
  %s6 = inlined_call_operand.vmem [shape: bf16[1,4,128], index: 6, kind: input, shape index: {}]
  %s7 = inlined_call_operand.hbm [shape: bf16[1,4,128], index: 7, kind: output, shape index: {}]
  %s8 = sld [smem:[#allocation0]]
  $region38: #{tpu_custom_call.1} parent=0
    _
  %s10 = ssub.s32 1, %s8
  %s11 = scalar_select 0, %s10, %s8
  $region1: #{tpu_custom_call.1} parent=0
    #allocation3 [shape = 'u8[1024]{0}', space=vmem, size = 0x400, scoped, tag = 'output window, operand 0, single buffered']
    #allocation4 [shape = 's32[1]{0}', space=sflag, size = 0x4, scoped, tag = 'scoped memory for tpu_custom_call.1']
    %12 = vsyncpa [#allocation4], 0
    // Predicated region
    $region2: #{tpu_custom_call.1} parent=1 // pred_check
      _
    $region3: #{tpu_custom_call.1} parent=1 // pred_check_branch
      %14 = sbr.rel (0) target = $region5
    $region4: #{tpu_custom_call.1} parent=1 // pred_region
      _
    $region5: #{tpu_custom_call.1} parent=1 // pred_fallthru
      _
    // Predicated region
    $region6: #{tpu_custom_call.1} parent=1 // pred_check
      _
    $region7: #{tpu_custom_call.1} parent=1 // pred_check_branch
      %16 = sbr.rel (0) target = $region9
    $region8: #{tpu_custom_call.1} parent=1 // pred_region
      _
    $region9: #{tpu_custom_call.1} parent=1 // pred_fallthru
      _
    // Predicated region
    $region10: #{tpu_custom_call.1} parent=1 // pred_check
      _
    $region11: #{tpu_custom_call.1} parent=1 // pred_check_branch
      %18 = sbr.rel (0) target = $region13
    $region12: #{tpu_custom_call.1} parent=1 // pred_region
      _
    $region13: #{tpu_custom_call.1} parent=1 // pred_fallthru
      _
    // Predicated region
    $region14: #{tpu_custom_call.1} parent=1 // pred_check
      _
    $region15: #{tpu_custom_call.1} parent=1 // pred_check_branch
      %20 = sbr.rel (0) target = $region17
    $region16: #{tpu_custom_call.1} parent=1 // pred_region
      _
    $region17: #{tpu_custom_call.1} parent=1 // pred_fallthru
      _
    // Predicated region
    $region18: #{tpu_custom_call.1} parent=1 // pred_check
      _
    $region19: #{tpu_custom_call.1} parent=1 // pred_check_branch
      %22 = sbr.rel (0) target = $region21
    $region20: #{tpu_custom_call.1} parent=1 // pred_region
      _
    $region21: #{tpu_custom_call.1} parent=1 // pred_fallthru
      _
    // Predicated region
    $region22: #{tpu_custom_call.1} parent=1 // pred_check
      _
    $region23: #{tpu_custom_call.1} parent=1 // pred_check_branch
      %24 = sbr.rel (0) target = $region25
    $region24: #{tpu_custom_call.1} parent=1 // pred_region
      _
    $region25: #{tpu_custom_call.1} parent=1 // pred_fallthru
      _
    // Predicated region
    $region26: #{tpu_custom_call.1} parent=1 // pred_check
      _
    $region27: #{tpu_custom_call.1} parent=1 // pred_check_branch
      %26 = sbr.rel (0) target = $region29
    $region28: #{tpu_custom_call.1} parent=1 // pred_region
      _
    $region29: #{tpu_custom_call.1} parent=1 // pred_fallthru
      _
    %v28 = vld [vmem:[%s0] sm:$0xf]
    %v29 = vld [vmem:[%s0 + $0x4] sm:$0xf]
    %v30 = vld [vmem:[%s0 + $0x8] sm:$0xf]
    %v31 = vld [vmem:[%s0 + $0xc] sm:$0xf]
    %v32 = vld [vmem:[%s0 + $0x10] sm:$0xf]
    %v33 = vld [vmem:[%s0 + $0x14] sm:$0xf]
    %v34 = vld [vmem:[%s0 + $0x18] sm:$0xf]
    %v35 = vld [vmem:[%s0 + $0x1c] sm:$0xf]
    %v36 = vld [vmem:[%s0 + $0x20] sm:$0xf]
    %v37 = vld [vmem:[%s0 + $0x24] sm:$0xf]
    %v38 = vld [vmem:[%s0 + $0x28] sm:$0xf]
    %v39 = vld [vmem:[%s0 + $0x2c] sm:$0xf]
    %v40 = vld [vmem:[%s0 + $0x30] sm:$0xf]
    %v41 = vld [vmem:[%s0 + $0x34] sm:$0xf]
    %v42 = vld [vmem:[%s0 + $0x38] sm:$0xf]
    %v43 = vld [vmem:[%s0 + $0x3c] sm:$0xf]
    %v44 = vld [vmem:[%s0 + $0x40] sm:$0xf]
    %v45 = vld [vmem:[%s0 + $0x44] sm:$0xf]
    %v46 = vld [vmem:[%s0 + $0x48] sm:$0xf]
    %v47 = vld [vmem:[%s0 + $0x4c] sm:$0xf]
    %v48 = vld [vmem:[%s0 + $0x50] sm:$0xf]
    %v49 = vld [vmem:[%s0 + $0x54] sm:$0xf]
    %v50 = vld [vmem:[%s0 + $0x58] sm:$0xf]
    %v51 = vld [vmem:[%s0 + $0x5c] sm:$0xf]
    %v52 = vld [vmem:[%s0 + $0x60] sm:$0xf]
    %v53 = vld [vmem:[%s0 + $0x64] sm:$0xf]
    %v54 = vld [vmem:[%s0 + $0x68] sm:$0xf]
    %v55 = vld [vmem:[%s0 + $0x6c] sm:$0xf]
    %v56 = vld [vmem:[%s0 + $0x70] sm:$0xf]
    %v57 = vld [vmem:[%s0 + $0x74] sm:$0xf]
    %v58 = vld [vmem:[%s0 + $0x78] sm:$0xf]
    %v59 = vld [vmem:[%s0 + $0x7c] sm:$0xf]
    %v60 = vld [vmem:[%s0 + $0x80] sm:$0xf]
    %v61 = vld [vmem:[%s0 + $0x84] sm:$0xf]
    %v62 = vld [vmem:[%s0 + $0x88] sm:$0xf]
    %v63 = vld [vmem:[%s0 + $0x8c] sm:$0xf]
    %v64 = vld [vmem:[%s0 + $0x90] sm:$0xf]
    %v65 = vld [vmem:[%s0 + $0x94] sm:$0xf]
    %v66 = vld [vmem:[%s0 + $0x98] sm:$0xf]
    %v67 = vld [vmem:[%s0 + $0x9c] sm:$0xf]
    %v68 = vld [vmem:[%s1] sm:$0x7]
    %v109 = vunpack.c.l.b16 %v28
    %v110 = vunpack.c.l.b16 %v29
    %v111 = vunpack.c.l.b16 %v30
    %v112 = vunpack.c.l.b16 %v31
    %v113 = vunpack.c.l.b16 %v32
    %v114 = vunpack.c.l.b16 %v33
    %v115 = vunpack.c.l.b16 %v34
    %v116 = vunpack.c.l.b16 %v35
    %v117 = vunpack.c.l.b16 %v36
    %v118 = vunpack.c.l.b16 %v37
    %v119 = vunpack.c.l.b16 %v38
    %v120 = vunpack.c.l.b16 %v39
    %v121 = vunpack.c.l.b16 %v40
    %v122 = vunpack.c.l.b16 %v41
    %v123 = vunpack.c.l.b16 %v42
    %v124 = vunpack.c.l.b16 %v43
    %v125 = vunpack.c.l.b16 %v44
    %v126 = vunpack.c.l.b16 %v45
    %v127 = vunpack.c.l.b16 %v46
    %v128 = vunpack.c.l.b16 %v47
    %v129 = vunpack.c.l.b16 %v48
    %v130 = vunpack.c.l.b16 %v49
    %v131 = vunpack.c.l.b16 %v50
    %v132 = vunpack.c.l.b16 %v51
    %v133 = vunpack.c.l.b16 %v52
    %v134 = vunpack.c.l.b16 %v53
    %v135 = vunpack.c.l.b16 %v54
    %v136 = vunpack.c.l.b16 %v55
    %v137 = vunpack.c.l.b16 %v56
    %v138 = vunpack.c.l.b16 %v57
    %v139 = vunpack.c.l.b16 %v58
    %v140 = vunpack.c.l.b16 %v59
    %v141 = vunpack.c.l.b16 %v60
    %v142 = vunpack.c.l.b16 %v61
    %v143 = vunpack.c.l.b16 %v62
    %v144 = vunpack.c.l.b16 %v63
    %v145 = vunpack.c.l.b16 %v64
    %v146 = vunpack.c.l.b16 %v65
    %v147 = vunpack.c.l.b16 %v66
    %v148 = vunpack.c.l.b16 %v67
    %v149 = vpack.c.b16 %v110, %v109
    %v150 = vpack.c.b16 %v112, %v111
    %v151 = vpack.c.b16 %v114, %v113
    %v152 = vpack.c.b16 %v116, %v115
    %v153 = vpack.c.b16 %v118, %v117
    %v154 = vpack.c.b16 %v120, %v119
    %v155 = vpack.c.b16 %v122, %v121
    %v156 = vpack.c.b16 %v124, %v123
    %v157 = vpack.c.b16 %v126, %v125
    %v158 = vpack.c.b16 %v128, %v127
    %v159 = vpack.c.b16 %v130, %v129
    %v160 = vpack.c.b16 %v132, %v131
    %v161 = vpack.c.b16 %v134, %v133
    %v162 = vpack.c.b16 %v136, %v135
    %v163 = vpack.c.b16 %v138, %v137
    %v164 = vpack.c.b16 %v140, %v139
    %v165 = vpack.c.b16 %v142, %v141
    %v166 = vpack.c.b16 %v144, %v143
    %v167 = vpack.c.b16 %v146, %v145
    %v168 = vpack.c.b16 %v148, %v147
    %vm169 = vcmask 39936
    %v171 = vsel %vm169, %v149, 0
    %v174 = vsel %vm169, %v150, 0
    %v177 = vsel %vm169, %v151, 0
    %v180 = vsel %vm169, %v152, 0
    %v183 = vsel %vm169, %v153, 0
    %v186 = vsel %vm169, %v154, 0
    %v189 = vsel %vm169, %v155, 0
    %v192 = vsel %vm169, %v156, 0
    %v195 = vsel %vm169, %v157, 0
    %v198 = vsel %vm169, %v158, 0
    %v201 = vsel %vm169, %v159, 0
    %v204 = vsel %vm169, %v160, 0
    %v207 = vsel %vm169, %v161, 0
    %v210 = vsel %vm169, %v162, 0
    %v213 = vsel %vm169, %v163, 0
    %v216 = vsel %vm169, %v164, 0
    %v219 = vsel %vm169, %v165, 0
    %v222 = vsel %vm169, %v166, 0
    %v225 = vsel %vm169, %v167, 0
    %v228 = vsel %vm169, %v168, 0
    %vm230 = vcmask 1041408
    %vm231 = vcmask 1042432
    %v232 = vsel %vm230, 4294967295, 65535
    %v233 = vsel %vm231, %v232, 0
    %v235 = vand.u32 %v68, %v233
    %237 = vmatprep.subr.bf16.mxu0 0
    %238 = vmatpush1.bf16.msra.mxu0 %v235
    %239 = vmatprep.subr.bf16.mxu0 0
    %240 = vmatpush1.bf16.msra.mxu0 0
    %241 = vmatprep.subr.bf16.mxu0 0
    %242 = vmatpush1.bf16.msra.mxu0 0
    %243 = vmatprep.subr.bf16.mxu0 0
    %244 = vmatpush1.bf16.msra.mxu0 0
    %245 = vmatprep.subr.bf16.mxu0 0
    %246 = vmatpush1.bf16.msra.mxu0 0
    %247 = vmatprep.subr.bf16.mxu0 0
    %248 = vmatpush1.bf16.msra.mxu0 0
    %249 = vmatprep.subr.bf16.mxu0 0
    %250 = vmatpush1.bf16.msra.mxu0 0
    %251 = vmatprep.subr.bf16.mxu0 0
    %252 = vmatpush1.bf16.msra.mxu0 0
    %253 = vmatprep.subr.bf16.mxu0 0
    %254 = vmatpush1.bf16.msra.mxu0 0
    %255 = vmatprep.subr.bf16.mxu0 0
    %256 = vmatpush1.bf16.msra.mxu0 0
    %257 = vmatprep.subr.bf16.mxu0 0
    %258 = vmatpush1.bf16.msra.mxu0 0
    %259 = vmatprep.subr.bf16.mxu0 0
    %260 = vmatpush1.bf16.msra.mxu0 0
    %261 = vmatprep.subr.bf16.mxu0 0
    %262 = vmatpush1.bf16.msra.mxu0 0
    %263 = vmatprep.subr.bf16.mxu0 0
    %264 = vmatpush1.bf16.msra.mxu0 0
    %265 = vmatprep.subr.bf16.mxu0 0
    %266 = vmatpush1.bf16.msra.mxu0 0
    %267 = vmatprep.subr.bf16.mxu0 0
    %268 = vmatpush1.bf16.msra.mxu0 0
    %269 = vmatprep.mubr.bf16.mxu0 0
    %270 = vmatmul.mubr.bf16.gmra.mrb[0].mxu0 %v171
    %v271 = vpop.f32.mrb[0].mxu0
    %v272 = vadd.f32 0.0, %v271
    %v273 = vpop.f32.mrb[0].mxu0
    %v274 = vpop.f32.mrb[0].mxu0
    %v275 = vadd.f32 0.0, %v274
    %v276 = vpop.f32.mrb[0].mxu0
    %277 = vmatprep.mubr.bf16.mxu0 0
    %278 = vmatmul.mubr.bf16.gmra.mrb[0].mxu0 %v174
    %v279 = vpop.f32.mrb[0].mxu0
    %v280 = vadd.f32 0.0, %v279
    %v281 = vpop.f32.mrb[0].mxu0
    %v282 = vpop.f32.mrb[0].mxu0
    %v283 = vadd.f32 0.0, %v282
    %v284 = vpop.f32.mrb[0].mxu0
    %285 = vmatprep.mubr.bf16.mxu0 0
    %286 = vmatmul.mubr.bf16.gmra.mrb[0].mxu0 %v177
    %v287 = vpop.f32.mrb[0].mxu0
    %v288 = vadd.f32 0.0, %v287
    %v289 = vpop.f32.mrb[0].mxu0
    %v290 = vpop.f32.mrb[0].mxu0
    %v291 = vadd.f32 0.0, %v290
    %v292 = vpop.f32.mrb[0].mxu0
    %293 = vmatprep.mubr.bf16.mxu0 0
    %294 = vmatmul.mubr.bf16.gmra.mrb[0].mxu0 %v180
    %v295 = vpop.f32.mrb[0].mxu0
    %v296 = vadd.f32 0.0, %v295
    %v297 = vpop.f32.mrb[0].mxu0
    %v298 = vpop.f32.mrb[0].mxu0
    %v299 = vadd.f32 0.0, %v298
    %v300 = vpop.f32.mrb[0].mxu0
    %301 = vmatprep.mubr.bf16.mxu0 0
    %302 = vmatmul.mubr.bf16.gmra.mrb[0].mxu0 %v183
    %v303 = vpop.f32.mrb[0].mxu0
    %v304 = vadd.f32 0.0, %v303
    %v305 = vpop.f32.mrb[0].mxu0
    %v306 = vpop.f32.mrb[0].mxu0
    %v307 = vadd.f32 0.0, %v306
    %v308 = vpop.f32.mrb[0].mxu0
    %309 = vmatprep.mubr.bf16.mxu0 0
    %310 = vmatmul.mubr.bf16.gmra.mrb[0].mxu0 %v186
    %v311 = vpop.f32.mrb[0].mxu0
    %v312 = vadd.f32 0.0, %v311
    %v313 = vpop.f32.mrb[0].mxu0
    %v314 = vpop.f32.mrb[0].mxu0
    %v315 = vadd.f32 0.0, %v314
    %v316 = vpop.f32.mrb[0].mxu0
    %317 = vmatprep.mubr.bf16.mxu0 0
    %318 = vmatmul.mubr.bf16.gmra.mrb[0].mxu0 %v189
    %v319 = vpop.f32.mrb[0].mxu0
    %v320 = vadd.f32 0.0, %v319
    %v321 = vpop.f32.mrb[0].mxu0
    %v322 = vpop.f32.mrb[0].mxu0
    %v323 = vadd.f32 0.0, %v322
    %v324 = vpop.f32.mrb[0].mxu0
    %325 = vmatprep.mubr.bf16.mxu0 0
    %326 = vmatmul.mubr.bf16.gmra.mrb[0].mxu0 %v192
    %v327 = vpop.f32.mrb[0].mxu0
    %v328 = vadd.f32 0.0, %v327
    %v329 = vpop.f32.mrb[0].mxu0
    %v330 = vpop.f32.mrb[0].mxu0
    %v331 = vadd.f32 0.0, %v330
    %v332 = vpop.f32.mrb[0].mxu0
    %333 = vmatprep.mubr.bf16.mxu0 0
    %334 = vmatmul.mubr.bf16.gmra.mrb[0].mxu0 %v195
    %v335 = vpop.f32.mrb[0].mxu0
    %v336 = vadd.f32 0.0, %v335
    %v337 = vpop.f32.mrb[0].mxu0
    %v338 = vpop.f32.mrb[0].mxu0
    %v339 = vadd.f32 0.0, %v338
    %v340 = vpop.f32.mrb[0].mxu0
    %341 = vmatprep.mubr.bf16.mxu0 0
    %342 = vmatmul.mubr.bf16.gmra.mrb[0].mxu0 %v198
    %v343 = vpop.f32.mrb[0].mxu0
    %v344 = vadd.f32 0.0, %v343
    %v345 = vpop.f32.mrb[0].mxu0
    %v346 = vpop.f32.mrb[0].mxu0
    %v347 = vadd.f32 0.0, %v346
    %v348 = vpop.f32.mrb[0].mxu0
    %349 = vmatprep.mubr.bf16.mxu0 0
    %350 = vmatmul.mubr.bf16.gmra.mrb[0].mxu0 %v201
    %v351 = vpop.f32.mrb[0].mxu0
    %v352 = vadd.f32 0.0, %v351
    %v353 = vpop.f32.mrb[0].mxu0
    %v354 = vpop.f32.mrb[0].mxu0
    %v355 = vadd.f32 0.0, %v354
    %v356 = vpop.f32.mrb[0].mxu0
    %357 = vmatprep.mubr.bf16.mxu0 0
    %358 = vmatmul.mubr.bf16.gmra.mrb[0].mxu0 %v204
    %v359 = vpop.f32.mrb[0].mxu0
    %v360 = vadd.f32 0.0, %v359
    %v361 = vpop.f32.mrb[0].mxu0
    %v362 = vpop.f32.mrb[0].mxu0
    %v363 = vadd.f32 0.0, %v362
    %v364 = vpop.f32.mrb[0].mxu0
    %365 = vmatprep.mubr.bf16.mxu0 0
    %366 = vmatmul.mubr.bf16.gmra.mrb[0].mxu0 %v207
    %v367 = vpop.f32.mrb[0].mxu0
    %v368 = vadd.f32 0.0, %v367
    %v369 = vpop.f32.mrb[0].mxu0
    %v370 = vpop.f32.mrb[0].mxu0
    %v371 = vadd.f32 0.0, %v370
    %v372 = vpop.f32.mrb[0].mxu0
    %373 = vmatprep.mubr.bf16.mxu0 0
    %374 = vmatmul.mubr.bf16.gmra.mrb[0].mxu0 %v210
    %v375 = vpop.f32.mrb[0].mxu0
    %v376 = vadd.f32 0.0, %v375
    %v377 = vpop.f32.mrb[0].mxu0
    %v378 = vpop.f32.mrb[0].mxu0
    %v379 = vadd.f32 0.0, %v378
    %v380 = vpop.f32.mrb[0].mxu0
    %381 = vmatprep.mubr.bf16.mxu0 0
    %382 = vmatmul.mubr.bf16.gmra.mrb[0].mxu0 %v213
    %v383 = vpop.f32.mrb[0].mxu0
    %v384 = vadd.f32 0.0, %v383
    %v385 = vpop.f32.mrb[0].mxu0
    %v386 = vpop.f32.mrb[0].mxu0
    %v387 = vadd.f32 0.0, %v386
    %v388 = vpop.f32.mrb[0].mxu0
    %389 = vmatprep.mubr.bf16.mxu0 0
    %390 = vmatmul.mubr.bf16.gmra.mrb[0].mxu0 %v216
    %v391 = vpop.f32.mrb[0].mxu0
    %v392 = vadd.f32 0.0, %v391
    %v393 = vpop.f32.mrb[0].mxu0
    %v394 = vpop.f32.mrb[0].mxu0
    %v395 = vadd.f32 0.0, %v394
    %v396 = vpop.f32.mrb[0].mxu0
    %397 = vmatprep.mubr.bf16.mxu0 0
    %398 = vmatmul.mubr.bf16.gmra.mrb[0].mxu0 %v219
    %v399 = vpop.f32.mrb[0].mxu0
    %v400 = vadd.f32 0.0, %v399
    %v401 = vpop.f32.mrb[0].mxu0
    %v402 = vpop.f32.mrb[0].mxu0
    %v403 = vadd.f32 0.0, %v402
    %v404 = vpop.f32.mrb[0].mxu0
    %405 = vmatprep.mubr.bf16.mxu0 0
    %406 = vmatmul.mubr.bf16.gmra.mrb[0].mxu0 %v222
    %v407 = vpop.f32.mrb[0].mxu0
    %v408 = vadd.f32 0.0, %v407
    %v409 = vpop.f32.mrb[0].mxu0
    %v410 = vpop.f32.mrb[0].mxu0
    %v411 = vadd.f32 0.0, %v410
    %v412 = vpop.f32.mrb[0].mxu0
    %413 = vmatprep.mubr.bf16.mxu0 0
    %414 = vmatmul.mubr.bf16.gmra.mrb[0].mxu0 %v225
    %v415 = vpop.f32.mrb[0].mxu0
    %v416 = vadd.f32 0.0, %v415
    %v417 = vpop.f32.mrb[0].mxu0
    %v418 = vpop.f32.mrb[0].mxu0
    %v419 = vadd.f32 0.0, %v418
    %v420 = vpop.f32.mrb[0].mxu0
    %421 = vmatprep.mubr.bf16.mxu0 0
    %422 = vmatmul.mubr.bf16.gmra.mrb[0].mxu0 %v228
    %v423 = vpop.f32.mrb[0].mxu0
    %v424 = vadd.f32 0.0, %v423
    %v425 = vpop.f32.mrb[0].mxu0
    %v426 = vpop.f32.mrb[0].mxu0
    %v427 = vadd.f32 0.0, %v426
    %v428 = vpop.f32.mrb[0].mxu0
    %429 = vdwg.mxu0
    %v430 = vmax.f32 %v272, 0.0
    %v431 = vmax.f32 %v275, 0.0
    %v432 = vmax.f32 %v280, 0.0
    %v433 = vmax.f32 %v283, 0.0
    %v434 = vmax.f32 %v288, 0.0
    %v435 = vmax.f32 %v291, 0.0
    %v436 = vmax.f32 %v296, 0.0
    %v437 = vmax.f32 %v299, 0.0
    %v438 = vmax.f32 %v304, 0.0
    %v439 = vmax.f32 %v307, 0.0
    %v440 = vmax.f32 %v312, 0.0
    %v441 = vmax.f32 %v315, 0.0
    %v442 = vmax.f32 %v320, 0.0
    %v443 = vmax.f32 %v323, 0.0
    %v444 = vmax.f32 %v328, 0.0
    %v445 = vmax.f32 %v331, 0.0
    %v446 = vmax.f32 %v336, 0.0
    %v447 = vmax.f32 %v339, 0.0
    %v448 = vmax.f32 %v344, 0.0
    %v449 = vmax.f32 %v347, 0.0
    %v450 = vmax.f32 %v352, 0.0
    %v451 = vmax.f32 %v355, 0.0
    %v452 = vmax.f32 %v360, 0.0
    %v453 = vmax.f32 %v363, 0.0
    %v454 = vmax.f32 %v368, 0.0
    %v455 = vmax.f32 %v371, 0.0
    %v456 = vmax.f32 %v376, 0.0
    %v457 = vmax.f32 %v379, 0.0
    %v458 = vmax.f32 %v384, 0.0
    %v459 = vmax.f32 %v387, 0.0
    %v460 = vmax.f32 %v392, 0.0
    %v461 = vmax.f32 %v395, 0.0
    %v462 = vmax.f32 %v400, 0.0
    %v463 = vmax.f32 %v403, 0.0
    %v464 = vmax.f32 %v408, 0.0
    %v465 = vmax.f32 %v411, 0.0
    %v466 = vmax.f32 %v416, 0.0
    %v467 = vmax.f32 %v419, 0.0
    %v468 = vmax.f32 %v424, 0.0
    %v469 = vmax.f32 %v427, 0.0
    %v470 = vpack.c.bf16 %v431, %v430
    %v471 = vpack.c.bf16 %v433, %v432
    %v472 = vpack.c.bf16 %v435, %v434
    %v473 = vpack.c.bf16 %v437, %v436
    %v474 = vpack.c.bf16 %v439, %v438
    %v475 = vpack.c.bf16 %v441, %v440
    %v476 = vpack.c.bf16 %v443, %v442
    %v477 = vpack.c.bf16 %v445, %v444
    %v478 = vpack.c.bf16 %v447, %v446
    %v479 = vpack.c.bf16 %v449, %v448
    %v480 = vpack.c.bf16 %v451, %v450
    %v481 = vpack.c.bf16 %v453, %v452
    %v482 = vpack.c.bf16 %v455, %v454
    %v483 = vpack.c.bf16 %v457, %v456
    %v484 = vpack.c.bf16 %v459, %v458
    %v485 = vpack.c.bf16 %v461, %v460
    %v486 = vpack.c.bf16 %v463, %v462
    %v487 = vpack.c.bf16 %v465, %v464
    %v488 = vpack.c.bf16 %v467, %v466
    %v489 = vpack.c.bf16 %v469, %v468
    %vm490 = vcmask 64512
    %491 = vst.msk [vmem:[#allocation2] sm:$0xff] %vm490, %v470
    %492 = vst.msk [vmem:[#allocation2 + $0x8] sm:$0xff] %vm490, %v471
    %493 = vst.msk [vmem:[#allocation2 + $0x10] sm:$0xff] %vm490, %v472
    %494 = vst.msk [vmem:[#allocation2 + $0x18] sm:$0xff] %vm490, %v473
    %495 = vst.msk [vmem:[#allocation2 + $0x20] sm:$0xff] %vm490, %v474
    %496 = vst.msk [vmem:[#allocation2 + $0x28] sm:$0xff] %vm490, %v475
    %497 = vst.msk [vmem:[#allocation2 + $0x30] sm:$0xff] %vm490, %v476
    %498 = vst.msk [vmem:[#allocation2 + $0x38] sm:$0xff] %vm490, %v477
    %499 = vst.msk [vmem:[#allocation2 + $0x40] sm:$0xff] %vm490, %v478
    %500 = vst.msk [vmem:[#allocation2 + $0x48] sm:$0xff] %vm490, %v479
    %501 = vst.msk [vmem:[#allocation2 + $0x50] sm:$0xff] %vm490, %v480
    %502 = vst.msk [vmem:[#allocation2 + $0x58] sm:$0xff] %vm490, %v481
    %503 = vst.msk [vmem:[#allocation2 + $0x60] sm:$0xff] %vm490, %v482
    %504 = vst.msk [vmem:[#allocation2 + $0x68] sm:$0xff] %vm490, %v483
    %505 = vst.msk [vmem:[#allocation2 + $0x70] sm:$0xff] %vm490, %v484
    %506 = vst.msk [vmem:[#allocation2 + $0x78] sm:$0xff] %vm490, %v485
    %507 = vst.msk [vmem:[#allocation2 + $0x80] sm:$0xff] %vm490, %v486
    %508 = vst.msk [vmem:[#allocation2 + $0x88] sm:$0xff] %vm490, %v487
    %509 = vst.msk [vmem:[#allocation2 + $0x90] sm:$0xff] %vm490, %v488
    %510 = vst.msk [vmem:[#allocation2 + $0x98] sm:$0xff] %vm490, %v489
    %v511 = vld [vmem:[%s3] sm:$0x1]
    %v513 = vlaneseq
    %v514 = vshrl.u32 %v513, 7
    %v515 = vsub.s32 0, %v514
    %v516 = vrot.slane %v511, %v515
    %v518 = vld [vmem:[#allocation2] sm:$0xff]
    %v519 = vld [vmem:[#allocation2 + $0x8] sm:$0xff]
    %v520 = vld [vmem:[#allocation2 + $0x10] sm:$0xff]
    %v521 = vld [vmem:[#allocation2 + $0x18] sm:$0xff]
    %v522 = vld [vmem:[#allocation2 + $0x20] sm:$0xff]
    %v523 = vld [vmem:[#allocation2 + $0x28] sm:$0xff]
    %v524 = vld [vmem:[#allocation2 + $0x30] sm:$0xff]
    %v525 = vld [vmem:[#allocation2 + $0x38] sm:$0xff]
    %v526 = vld [vmem:[#allocation2 + $0x50] sm:$0xff]
    %v527 = vld [vmem:[#allocation2 + $0x58] sm:$0xff]
    %v528 = vld [vmem:[#allocation2 + $0x60] sm:$0xff]
    %v529 = vld [vmem:[#allocation2 + $0x68] sm:$0xff]
    %v530 = vld [vmem:[#allocation2 + $0x70] sm:$0xff]
    %v531 = vld [vmem:[#allocation2 + $0x78] sm:$0xff]
    %v532 = vld [vmem:[#allocation2 + $0x80] sm:$0xff]
    %v533 = vld [vmem:[#allocation2 + $0x88] sm:$0xff]
    %v534 = vld [vmem:[%s2] sm:$0xf]
    %v551 = vunpack.c.l.b16 %v518
    %v552 = vunpack.c.l.b16 %v519
    %v553 = vunpack.c.l.b16 %v520
    %v554 = vunpack.c.l.b16 %v521
    %v555 = vunpack.c.l.b16 %v522
    %v556 = vunpack.c.l.b16 %v523
    %v557 = vunpack.c.l.b16 %v524
    %v558 = vunpack.c.l.b16 %v525
    %v559 = vunpack.c.l.b16 %v526
    %v560 = vunpack.c.l.b16 %v527
    %v561 = vunpack.c.l.b16 %v528
    %v562 = vunpack.c.l.b16 %v529
    %v563 = vunpack.c.l.b16 %v530
    %v564 = vunpack.c.l.b16 %v531
    %v565 = vunpack.c.l.b16 %v532
    %v566 = vunpack.c.l.b16 %v533
    %v567 = vpack.c.b16 %v552, %v551
    %v568 = vpack.c.b16 %v554, %v553
    %v569 = vpack.c.b16 %v556, %v555
    %v570 = vpack.c.b16 %v558, %v557
    %v571 = vpack.c.b16 %v560, %v559
    %v572 = vpack.c.b16 %v562, %v561
    %v573 = vpack.c.b16 %v564, %v563
    %v574 = vpack.c.b16 %v566, %v565
    %v576 = vsel %vm490, %v567, 0
    %v579 = vsel %vm490, %v568, 0
    %v582 = vsel %vm490, %v569, 0
    %v585 = vsel %vm490, %v570, 0
    %v588 = vsel %vm490, %v571, 0
    %v591 = vsel %vm490, %v572, 0
    %v594 = vsel %vm490, %v573, 0
    %v597 = vsel %vm490, %v574, 0
    %vm599 = vcmask 1043456
    %v601 = vsel %vm599, %v534, 0
    %603 = vmatprep.subr.bf16.mxu0 0
    %604 = vmatpush1.bf16.msra.mxu0 %v601
    %605 = vmatprep.subr.bf16.mxu0 0
    %606 = vmatpush1.bf16.msra.mxu0 0
    %607 = vmatprep.subr.bf16.mxu0 0
    %608 = vmatpush1.bf16.msra.mxu0 0
    %609 = vmatprep.subr.bf16.mxu0 0
    %610 = vmatpush1.bf16.msra.mxu0 0
    %611 = vmatprep.subr.bf16.mxu0 0
    %612 = vmatpush1.bf16.msra.mxu0 0
    %613 = vmatprep.subr.bf16.mxu0 0
    %614 = vmatpush1.bf16.msra.mxu0 0
    %615 = vmatprep.subr.bf16.mxu0 0
    %616 = vmatpush1.bf16.msra.mxu0 0
    %617 = vmatprep.subr.bf16.mxu0 0
    %618 = vmatpush1.bf16.msra.mxu0 0
    %619 = vmatprep.subr.bf16.mxu0 0
    %620 = vmatpush1.bf16.msra.mxu0 0
    %621 = vmatprep.subr.bf16.mxu0 0
    %622 = vmatpush1.bf16.msra.mxu0 0
    %623 = vmatprep.subr.bf16.mxu0 0
    %624 = vmatpush1.bf16.msra.mxu0 0
    %625 = vmatprep.subr.bf16.mxu0 0
    %626 = vmatpush1.bf16.msra.mxu0 0
    %627 = vmatprep.subr.bf16.mxu0 0
    %628 = vmatpush1.bf16.msra.mxu0 0
    %629 = vmatprep.subr.bf16.mxu0 0
    %630 = vmatpush1.bf16.msra.mxu0 0
    %631 = vmatprep.subr.bf16.mxu0 0
    %632 = vmatpush1.bf16.msra.mxu0 0
    %633 = vmatprep.subr.bf16.mxu0 0
    %634 = vmatpush1.bf16.msra.mxu0 0
    %635 = vmatprep.mubr.bf16.mxu0 0
    %636 = vmatmul.mubr.bf16.gmra.mrb[0].mxu0 %v576
    %v637 = vpop.f32.mrb[0].mxu0
    %v638 = vadd.f32 0.0, %v637
    %v639 = vpop.f32.mrb[0].mxu0
    %v640 = vpop.f32.mrb[0].mxu0
    %v641 = vadd.f32 0.0, %v640
    %v642 = vpop.f32.mrb[0].mxu0
    %643 = vmatprep.mubr.bf16.mxu0 0
    %644 = vmatmul.mubr.bf16.gmra.mrb[0].mxu0 %v579
    %v645 = vpop.f32.mrb[0].mxu0
    %v646 = vadd.f32 0.0, %v645
    %v647 = vpop.f32.mrb[0].mxu0
    %v648 = vpop.f32.mrb[0].mxu0
    %v649 = vadd.f32 0.0, %v648
    %v650 = vpop.f32.mrb[0].mxu0
    %651 = vmatprep.mubr.bf16.mxu0 0
    %652 = vmatmul.mubr.bf16.gmra.mrb[0].mxu0 %v582
    %v653 = vpop.f32.mrb[0].mxu0
    %v654 = vadd.f32 0.0, %v653
    %v655 = vpop.f32.mrb[0].mxu0
    %v656 = vpop.f32.mrb[0].mxu0
    %v657 = vadd.f32 0.0, %v656
    %v658 = vpop.f32.mrb[0].mxu0
    %659 = vmatprep.mubr.bf16.mxu0 0
    %660 = vmatmul.mubr.bf16.gmra.mrb[0].mxu0 %v585
    %v661 = vpop.f32.mrb[0].mxu0
    %v662 = vadd.f32 0.0, %v661
    %v663 = vpop.f32.mrb[0].mxu0
    %v664 = vpop.f32.mrb[0].mxu0
    %v665 = vadd.f32 0.0, %v664
    %v666 = vpop.f32.mrb[0].mxu0
    %667 = vmatprep.mubr.bf16.mxu0 0
    %668 = vmatmul.mubr.bf16.gmra.mrb[0].mxu0 %v588
    %v669 = vpop.f32.mrb[0].mxu0
    %v670 = vadd.f32 0.0, %v669
    %v671 = vpop.f32.mrb[0].mxu0
    %v672 = vpop.f32.mrb[0].mxu0
    %v673 = vadd.f32 0.0, %v672
    %v674 = vpop.f32.mrb[0].mxu0
    %675 = vmatprep.mubr.bf16.mxu0 0
    %676 = vmatmul.mubr.bf16.gmra.mrb[0].mxu0 %v591
    %v677 = vpop.f32.mrb[0].mxu0
    %v678 = vadd.f32 0.0, %v677
    %v679 = vpop.f32.mrb[0].mxu0
    %v680 = vpop.f32.mrb[0].mxu0
    %v681 = vadd.f32 0.0, %v680
    %v682 = vpop.f32.mrb[0].mxu0
    %683 = vmatprep.mubr.bf16.mxu0 0
    %684 = vmatmul.mubr.bf16.gmra.mrb[0].mxu0 %v594
    %v685 = vpop.f32.mrb[0].mxu0
    %v686 = vadd.f32 0.0, %v685
    %v687 = vpop.f32.mrb[0].mxu0
    %v688 = vpop.f32.mrb[0].mxu0
    %v689 = vadd.f32 0.0, %v688
    %v690 = vpop.f32.mrb[0].mxu0
    %691 = vmatprep.mubr.bf16.mxu0 0
    %692 = vmatmul.mubr.bf16.gmra.mrb[0].mxu0 %v597
    %v693 = vpop.f32.mrb[0].mxu0
    %v694 = vadd.f32 0.0, %v693
    %v695 = vpop.f32.mrb[0].mxu0
    %v696 = vpop.f32.mrb[0].mxu0
    %v697 = vadd.f32 0.0, %v696
    %v698 = vpop.f32.mrb[0].mxu0
    %699 = vdwg.mxu0
    %v700 = vadd.f32 %v516, %v638
    %v701 = vadd.f32 %v516, %v641
    %v702 = vadd.f32 %v516, %v646
    %v703 = vadd.f32 %v516, %v649
    %v704 = vadd.f32 %v516, %v654
    %v705 = vadd.f32 %v516, %v657
    %v706 = vadd.f32 %v516, %v662
    %v707 = vadd.f32 %v516, %v665
    %v708 = vadd.f32 %v516, %v670
    %v709 = vadd.f32 %v516, %v673
    %v710 = vadd.f32 %v516, %v678
    %v711 = vadd.f32 %v516, %v681
    %v712 = vadd.f32 %v516, %v686
    %v713 = vadd.f32 %v516, %v689
    %v714 = vadd.f32 %v516, %v694
    %v715 = vadd.f32 %v516, %v697
    %v716 = vunpack.c.h.b16 %v518
    %v717 = vunpack.c.h.b16 %v519
    %v718 = vunpack.c.h.b16 %v520
    %v719 = vunpack.c.h.b16 %v521
    %v720 = vunpack.c.h.b16 %v522
    %v721 = vunpack.c.h.b16 %v523
    %v722 = vunpack.c.h.b16 %v524
    %v723 = vunpack.c.h.b16 %v525
    %v724 = vunpack.c.h.b16 %v526
    %v725 = vunpack.c.h.b16 %v527
    %v726 = vunpack.c.h.b16 %v528
    %v727 = vunpack.c.h.b16 %v529
    %v728 = vunpack.c.h.b16 %v530
    %v729 = vunpack.c.h.b16 %v531
    %v730 = vunpack.c.h.b16 %v532
    %v731 = vunpack.c.h.b16 %v533
    %v732 = vpack.c.b16 %v551, %v551
    %v733 = vpack.c.b16 %v716, %v716
    %v734 = vpack.c.b16 %v552, %v552
    %v735 = vpack.c.b16 %v717, %v717
    %v736 = vpack.c.b16 %v553, %v553
    %v737 = vpack.c.b16 %v718, %v718
    %v738 = vpack.c.b16 %v554, %v554
    %v739 = vpack.c.b16 %v719, %v719
    %v740 = vpack.c.b16 %v555, %v555
    %v741 = vpack.c.b16 %v720, %v720
    %v742 = vpack.c.b16 %v556, %v556
    %v743 = vpack.c.b16 %v721, %v721
    %v744 = vpack.c.b16 %v557, %v557
    %v745 = vpack.c.b16 %v722, %v722
    %v746 = vpack.c.b16 %v558, %v558
    %v747 = vpack.c.b16 %v723, %v723
    %v748 = vpack.c.b16 %v559, %v559
    %v749 = vpack.c.b16 %v724, %v724
    %v750 = vpack.c.b16 %v560, %v560
    %v751 = vpack.c.b16 %v725, %v725
    %v752 = vpack.c.b16 %v561, %v561
    %v753 = vpack.c.b16 %v726, %v726
    %v754 = vpack.c.b16 %v562, %v562
    %v755 = vpack.c.b16 %v727, %v727
    %v756 = vpack.c.b16 %v563, %v563
    %v757 = vpack.c.b16 %v728, %v728
    %v758 = vpack.c.b16 %v564, %v564
    %v759 = vpack.c.b16 %v729, %v729
    %v760 = vpack.c.b16 %v565, %v565
    %v761 = vpack.c.b16 %v730, %v730
    %v762 = vpack.c.b16 %v566, %v566
    %v763 = vpack.c.b16 %v731, %v731
    %vm764 = vsmask.f32 3328
    %vm765 = vsmask.f32 7440
    %vm766 = vmor %vm764, %vm765
    %v768 = vshrl.u32 %v732, 16
    %v770 = vrot.slane %v768, 4
    %v771 = vshll.u32 %v732, 16
    %v773 = vrot.slane %v771, 5
    %v774 = vor.u32 %v770, %v773
    %v775 = vrot.slane %v774, 4
    %v777 = vshll.u32 %v733, 16
    %v779 = vrot.slane %v777, 5
    %v780 = vsel %vm766, %v775, %v779
    %v782 = vshrl.u32 %v734, 16
    %v784 = vrot.slane %v782, 4
    %v785 = vshll.u32 %v734, 16
    %v787 = vrot.slane %v785, 5
    %v788 = vor.u32 %v784, %v787
    %v789 = vrot.slane %v788, 4
    %v791 = vshll.u32 %v735, 16
    %v793 = vrot.slane %v791, 5
    %v794 = vsel %vm766, %v789, %v793
    %v796 = vshrl.u32 %v736, 16
    %v798 = vrot.slane %v796, 4
    %v799 = vshll.u32 %v736, 16
    %v801 = vrot.slane %v799, 5
    %v802 = vor.u32 %v798, %v801
    %v803 = vrot.slane %v802, 4
    %v805 = vshll.u32 %v737, 16
    %v807 = vrot.slane %v805, 5
    %v808 = vsel %vm766, %v803, %v807
    %v810 = vshrl.u32 %v738, 16
    %v812 = vrot.slane %v810, 4
    %v813 = vshll.u32 %v738, 16
    %v815 = vrot.slane %v813, 5
    %v816 = vor.u32 %v812, %v815
    %v817 = vrot.slane %v816, 4
    %v819 = vshll.u32 %v739, 16
    %v821 = vrot.slane %v819, 5
    %v822 = vsel %vm766, %v817, %v821
    %v824 = vshrl.u32 %v740, 16
    %v826 = vrot.slane %v824, 4
    %v827 = vshll.u32 %v740, 16
    %v829 = vrot.slane %v827, 5
    %v830 = vor.u32 %v826, %v829
    %v831 = vrot.slane %v830, 4
    %v833 = vshll.u32 %v741, 16
    %v835 = vrot.slane %v833, 5
    %v836 = vsel %vm766, %v831, %v835
    %v838 = vshrl.u32 %v742, 16
    %v840 = vrot.slane %v838, 4
    %v841 = vshll.u32 %v742, 16
    %v843 = vrot.slane %v841, 5
    %v844 = vor.u32 %v840, %v843
    %v845 = vrot.slane %v844, 4
    %v847 = vshll.u32 %v743, 16
    %v849 = vrot.slane %v847, 5
    %v850 = vsel %vm766, %v845, %v849
    %v852 = vshrl.u32 %v744, 16
    %v854 = vrot.slane %v852, 4
    %v855 = vshll.u32 %v744, 16
    %v857 = vrot.slane %v855, 5
    %v858 = vor.u32 %v854, %v857
    %v859 = vrot.slane %v858, 4
    %v861 = vshll.u32 %v745, 16
    %v863 = vrot.slane %v861, 5
    %v864 = vsel %vm766, %v859, %v863
    %v866 = vshrl.u32 %v746, 16
    %v868 = vrot.slane %v866, 4
    %v869 = vshll.u32 %v746, 16
    %v871 = vrot.slane %v869, 5
    %v872 = vor.u32 %v868, %v871
    %v873 = vrot.slane %v872, 4
    %v875 = vshll.u32 %v747, 16
    %v877 = vrot.slane %v875, 5
    %v878 = vsel %vm766, %v873, %v877
    %v880 = vshrl.u32 %v748, 16
    %v882 = vrot.slane %v880, 4
    %v883 = vshll.u32 %v748, 16
    %v885 = vrot.slane %v883, 5
    %v886 = vor.u32 %v882, %v885
    %v887 = vrot.slane %v886, 4
    %v889 = vshll.u32 %v749, 16
    %v891 = vrot.slane %v889, 5
    %v892 = vsel %vm766, %v887, %v891
    %v894 = vshrl.u32 %v750, 16
    %v896 = vrot.slane %v894, 4
    %v897 = vshll.u32 %v750, 16
    %v899 = vrot.slane %v897, 5
    %v900 = vor.u32 %v896, %v899
    %v901 = vrot.slane %v900, 4
    %v903 = vshll.u32 %v751, 16
    %v905 = vrot.slane %v903, 5
    %v906 = vsel %vm766, %v901, %v905
    %v908 = vshrl.u32 %v752, 16
    %v910 = vrot.slane %v908, 4
    %v911 = vshll.u32 %v752, 16
    %v913 = vrot.slane %v911, 5
    %v914 = vor.u32 %v910, %v913
    %v915 = vrot.slane %v914, 4
    %v917 = vshll.u32 %v753, 16
    %v919 = vrot.slane %v917, 5
    %v920 = vsel %vm766, %v915, %v919
    %v922 = vshrl.u32 %v754, 16
    %v924 = vrot.slane %v922, 4
    %v925 = vshll.u32 %v754, 16
    %v927 = vrot.slane %v925, 5
    %v928 = vor.u32 %v924, %v927
    %v929 = vrot.slane %v928, 4
    %v931 = vshll.u32 %v755, 16
    %v933 = vrot.slane %v931, 5
    %v934 = vsel %vm766, %v929, %v933
    %v936 = vshrl.u32 %v756, 16
    %v938 = vrot.slane %v936, 4
    %v939 = vshll.u32 %v756, 16
    %v941 = vrot.slane %v939, 5
    %v942 = vor.u32 %v938, %v941
    %v943 = vrot.slane %v942, 4
    %v945 = vshll.u32 %v757, 16
    %v947 = vrot.slane %v945, 5
    %v948 = vsel %vm766, %v943, %v947
    %v950 = vshrl.u32 %v758, 16
    %v952 = vrot.slane %v950, 4
    %v953 = vshll.u32 %v758, 16
    %v955 = vrot.slane %v953, 5
    %v956 = vor.u32 %v952, %v955
    %v957 = vrot.slane %v956, 4
    %v959 = vshll.u32 %v759, 16
    %v961 = vrot.slane %v959, 5
    %v962 = vsel %vm766, %v957, %v961
    %v964 = vshrl.u32 %v760, 16
    %v966 = vrot.slane %v964, 4
    %v967 = vshll.u32 %v760, 16
    %v969 = vrot.slane %v967, 5
    %v970 = vor.u32 %v966, %v969
    %v971 = vrot.slane %v970, 4
    %v973 = vshll.u32 %v761, 16
    %v975 = vrot.slane %v973, 5
    %v976 = vsel %vm766, %v971, %v975
    %v978 = vshrl.u32 %v762, 16
    %v980 = vrot.slane %v978, 4
    %v981 = vshll.u32 %v762, 16
    %v983 = vrot.slane %v981, 5
    %v984 = vor.u32 %v980, %v983
    %v985 = vrot.slane %v984, 4
    %v987 = vshll.u32 %v763, 16
    %v989 = vrot.slane %v987, 5
    %v990 = vsel %vm766, %v985, %v989
    %s991 = scalar_lea.vmem %s2, 4
    %v992 = vld [vmem:[%s991] sm:$0xf]
    %v993 = vunpack.c.l.b16 %v780
    %v994 = vunpack.c.l.b16 %v794
    %v995 = vunpack.c.l.b16 %v808
    %v996 = vunpack.c.l.b16 %v822
    %v997 = vunpack.c.l.b16 %v836
    %v998 = vunpack.c.l.b16 %v850
    %v999 = vunpack.c.l.b16 %v864
    %v1000 = vunpack.c.l.b16 %v878
    %v1001 = vunpack.c.l.b16 %v892
    %v1002 = vunpack.c.l.b16 %v906
    %v1003 = vunpack.c.l.b16 %v920
    %v1004 = vunpack.c.l.b16 %v934
    %v1005 = vunpack.c.l.b16 %v948
    %v1006 = vunpack.c.l.b16 %v962
    %v1007 = vunpack.c.l.b16 %v976
    %v1008 = vunpack.c.l.b16 %v990
    %v1009 = vpack.c.b16 %v994, %v993
    %v1010 = vpack.c.b16 %v996, %v995
    %v1011 = vpack.c.b16 %v998, %v997
    %v1012 = vpack.c.b16 %v1000, %v999
    %v1013 = vpack.c.b16 %v1002, %v1001
    %v1014 = vpack.c.b16 %v1004, %v1003
    %v1015 = vpack.c.b16 %v1006, %v1005
    %v1016 = vpack.c.b16 %v1008, %v1007
    %v1018 = vsel %vm490, %v1009, 0
    %v1021 = vsel %vm490, %v1010, 0
    %v1024 = vsel %vm490, %v1011, 0
    %v1027 = vsel %vm490, %v1012, 0
    %v1030 = vsel %vm490, %v1013, 0
    %v1033 = vsel %vm490, %v1014, 0
    %v1036 = vsel %vm490, %v1015, 0
    %v1039 = vsel %vm490, %v1016, 0
    %v1042 = vsel %vm599, %v992, 0
    %1044 = vmatprep.subr.bf16.mxu0 0
    %1045 = vmatpush1.bf16.msra.mxu0 %v1042
    %1046 = vmatprep.subr.bf16.mxu0 0
    %1047 = vmatpush1.bf16.msra.mxu0 0
    %1048 = vmatprep.subr.bf16.mxu0 0
    %1049 = vmatpush1.bf16.msra.mxu0 0
    %1050 = vmatprep.subr.bf16.mxu0 0
    %1051 = vmatpush1.bf16.msra.mxu0 0
    %1052 = vmatprep.subr.bf16.mxu0 0
    %1053 = vmatpush1.bf16.msra.mxu0 0
    %1054 = vmatprep.subr.bf16.mxu0 0
    %1055 = vmatpush1.bf16.msra.mxu0 0
    %1056 = vmatprep.subr.bf16.mxu0 0
    %1057 = vmatpush1.bf16.msra.mxu0 0
    %1058 = vmatprep.subr.bf16.mxu0 0
    %1059 = vmatpush1.bf16.msra.mxu0 0
    %1060 = vmatprep.subr.bf16.mxu0 0
    %1061 = vmatpush1.bf16.msra.mxu0 0
    %1062 = vmatprep.subr.bf16.mxu0 0
    %1063 = vmatpush1.bf16.msra.mxu0 0
    %1064 = vmatprep.subr.bf16.mxu0 0
    %1065 = vmatpush1.bf16.msra.mxu0 0
    %1066 = vmatprep.subr.bf16.mxu0 0
    %1067 = vmatpush1.bf16.msra.mxu0 0
    %1068 = vmatprep.subr.bf16.mxu0 0
    %1069 = vmatpush1.bf16.msra.mxu0 0
    %1070 = vmatprep.subr.bf16.mxu0 0
    %1071 = vmatpush1.bf16.msra.mxu0 0
    %1072 = vmatprep.subr.bf16.mxu0 0
    %1073 = vmatpush1.bf16.msra.mxu0 0
    %1074 = vmatprep.subr.bf16.mxu0 0
    %1075 = vmatpush1.bf16.msra.mxu0 0
    %1076 = vmatprep.mubr.bf16.mxu0 0
    %1077 = vmatmul.mubr.bf16.gmra.mrb[0].mxu0 %v1018
    %v1078 = vpop.f32.mrb[0].mxu0
    %v1079 = vadd.f32 0.0, %v1078
    %v1080 = vpop.f32.mrb[0].mxu0
    %v1081 = vpop.f32.mrb[0].mxu0
    %v1082 = vadd.f32 0.0, %v1081
    %v1083 = vpop.f32.mrb[0].mxu0
    %1084 = vmatprep.mubr.bf16.mxu0 0
    %1085 = vmatmul.mubr.bf16.gmra.mrb[0].mxu0 %v1021
    %v1086 = vpop.f32.mrb[0].mxu0
    %v1087 = vadd.f32 0.0, %v1086
    %v1088 = vpop.f32.mrb[0].mxu0
    %v1089 = vpop.f32.mrb[0].mxu0
    %v1090 = vadd.f32 0.0, %v1089
    %v1091 = vpop.f32.mrb[0].mxu0
    %1092 = vmatprep.mubr.bf16.mxu0 0
    %1093 = vmatmul.mubr.bf16.gmra.mrb[0].mxu0 %v1024
    %v1094 = vpop.f32.mrb[0].mxu0
    %v1095 = vadd.f32 0.0, %v1094
    %v1096 = vpop.f32.mrb[0].mxu0
    %v1097 = vpop.f32.mrb[0].mxu0
    %v1098 = vadd.f32 0.0, %v1097
    %v1099 = vpop.f32.mrb[0].mxu0
    %1100 = vmatprep.mubr.bf16.mxu0 0
    %1101 = vmatmul.mubr.bf16.gmra.mrb[0].mxu0 %v1027
    %v1102 = vpop.f32.mrb[0].mxu0
    %v1103 = vadd.f32 0.0, %v1102
    %v1104 = vpop.f32.mrb[0].mxu0
    %v1105 = vpop.f32.mrb[0].mxu0
    %v1106 = vadd.f32 0.0, %v1105
    %v1107 = vpop.f32.mrb[0].mxu0
    %1108 = vmatprep.mubr.bf16.mxu0 0
    %1109 = vmatmul.mubr.bf16.gmra.mrb[0].mxu0 %v1030
    %v1110 = vpop.f32.mrb[0].mxu0
    %v1111 = vadd.f32 0.0, %v1110
    %v1112 = vpop.f32.mrb[0].mxu0
    %v1113 = vpop.f32.mrb[0].mxu0
    %v1114 = vadd.f32 0.0, %v1113
    %v1115 = vpop.f32.mrb[0].mxu0
    %1116 = vmatprep.mubr.bf16.mxu0 0
    %1117 = vmatmul.mubr.bf16.gmra.mrb[0].mxu0 %v1033
    %v1118 = vpop.f32.mrb[0].mxu0
    %v1119 = vadd.f32 0.0, %v1118
    %v1120 = vpop.f32.mrb[0].mxu0
    %v1121 = vpop.f32.mrb[0].mxu0
    %v1122 = vadd.f32 0.0, %v1121
    %v1123 = vpop.f32.mrb[0].mxu0
    %1124 = vmatprep.mubr.bf16.mxu0 0
    %1125 = vmatmul.mubr.bf16.gmra.mrb[0].mxu0 %v1036
    %v1126 = vpop.f32.mrb[0].mxu0
    %v1127 = vadd.f32 0.0, %v1126
    %v1128 = vpop.f32.mrb[0].mxu0
    %v1129 = vpop.f32.mrb[0].mxu0
    %v1130 = vadd.f32 0.0, %v1129
    %v1131 = vpop.f32.mrb[0].mxu0
    %1132 = vmatprep.mubr.bf16.mxu0 0
    %1133 = vmatmul.mubr.bf16.gmra.mrb[0].mxu0 %v1039
    %v1134 = vpop.f32.mrb[0].mxu0
    %v1135 = vadd.f32 0.0, %v1134
    %v1136 = vpop.f32.mrb[0].mxu0
    %v1137 = vpop.f32.mrb[0].mxu0
    %v1138 = vadd.f32 0.0, %v1137
    %v1139 = vpop.f32.mrb[0].mxu0
    %1140 = vdwg.mxu0
    %v1141 = vadd.f32 %v700, %v1079
    %v1142 = vadd.f32 %v701, %v1082
    %v1143 = vadd.f32 %v702, %v1087
    %v1144 = vadd.f32 %v703, %v1090
    %v1145 = vadd.f32 %v704, %v1095
    %v1146 = vadd.f32 %v705, %v1098
    %v1147 = vadd.f32 %v706, %v1103
    %v1148 = vadd.f32 %v707, %v1106
    %v1149 = vadd.f32 %v708, %v1111
    %v1150 = vadd.f32 %v709, %v1114
    %v1151 = vadd.f32 %v710, %v1119
    %v1152 = vadd.f32 %v711, %v1122
    %v1153 = vadd.f32 %v712, %v1127
    %v1154 = vadd.f32 %v713, %v1130
    %v1155 = vadd.f32 %v714, %v1135
    %v1156 = vadd.f32 %v715, %v1138
    %vm1157 = vcmask 1042432
    %vm1158 = vcmask 1046532
    %vm1159 = vmor %vm1157, %vm1158
    %v1160 = vrot.slane %v732, 5
    %v1161 = vrot.slane %v1160, 4
    %v1162 = vrot.slane %v733, 5
    %v1163 = vsel %vm1159, %v1161, %v1162
    %v1164 = vrot.slane %v734, 5
    %v1165 = vrot.slane %v1164, 4
    %v1166 = vrot.slane %v735, 5
    %v1167 = vsel %vm1159, %v1165, %v1166
    %v1168 = vrot.slane %v736, 5
    %v1169 = vrot.slane %v1168, 4
    %v1170 = vrot.slane %v737, 5
    %v1171 = vsel %vm1159, %v1169, %v1170
    %v1172 = vrot.slane %v738, 5
    %v1173 = vrot.slane %v1172, 4
    %v1174 = vrot.slane %v739, 5
    %v1175 = vsel %vm1159, %v1173, %v1174
    %v1176 = vrot.slane %v740, 5
    %v1177 = vrot.slane %v1176, 4
    %v1178 = vrot.slane %v741, 5
    %v1179 = vsel %vm1159, %v1177, %v1178
    %v1180 = vrot.slane %v742, 5
    %v1181 = vrot.slane %v1180, 4
    %v1182 = vrot.slane %v743, 5
    %v1183 = vsel %vm1159, %v1181, %v1182
    %v1184 = vrot.slane %v744, 5
    %v1185 = vrot.slane %v1184, 4
    %v1186 = vrot.slane %v745, 5
    %v1187 = vsel %vm1159, %v1185, %v1186
    %v1188 = vrot.slane %v746, 5
    %v1189 = vrot.slane %v1188, 4
    %v1190 = vrot.slane %v747, 5
    %v1191 = vsel %vm1159, %v1189, %v1190
    %v1192 = vrot.slane %v748, 5
    %v1193 = vrot.slane %v1192, 4
    %v1194 = vrot.slane %v749, 5
    %v1195 = vsel %vm1159, %v1193, %v1194
    %v1196 = vrot.slane %v750, 5
    %v1197 = vrot.slane %v1196, 4
    %v1198 = vrot.slane %v751, 5
    %v1199 = vsel %vm1159, %v1197, %v1198
    %v1200 = vrot.slane %v752, 5
    %v1201 = vrot.slane %v1200, 4
    %v1202 = vrot.slane %v753, 5
    %v1203 = vsel %vm1159, %v1201, %v1202
    %v1204 = vrot.slane %v754, 5
    %v1205 = vrot.slane %v1204, 4
    %v1206 = vrot.slane %v755, 5
    %v1207 = vsel %vm1159, %v1205, %v1206
    %v1208 = vrot.slane %v756, 5
    %v1209 = vrot.slane %v1208, 4
    %v1210 = vrot.slane %v757, 5
    %v1211 = vsel %vm1159, %v1209, %v1210
    %v1212 = vrot.slane %v758, 5
    %v1213 = vrot.slane %v1212, 4
    %v1214 = vrot.slane %v759, 5
    %v1215 = vsel %vm1159, %v1213, %v1214
    %v1216 = vrot.slane %v760, 5
    %v1217 = vrot.slane %v1216, 4
    %v1218 = vrot.slane %v761, 5
    %v1219 = vsel %vm1159, %v1217, %v1218
    %v1220 = vrot.slane %v762, 5
    %v1221 = vrot.slane %v1220, 4
    %v1222 = vrot.slane %v763, 5
    %v1223 = vsel %vm1159, %v1221, %v1222
    %s1224 = scalar_lea.vmem %s2, 8
    %v1225 = vld [vmem:[%s1224] sm:$0xf]
    %v1226 = vunpack.c.l.b16 %v1163
    %v1227 = vunpack.c.l.b16 %v1167
    %v1228 = vunpack.c.l.b16 %v1171
    %v1229 = vunpack.c.l.b16 %v1175
    %v1230 = vunpack.c.l.b16 %v1179
    %v1231 = vunpack.c.l.b16 %v1183
    %v1232 = vunpack.c.l.b16 %v1187
    %v1233 = vunpack.c.l.b16 %v1191
    %v1234 = vunpack.c.l.b16 %v1195
    %v1235 = vunpack.c.l.b16 %v1199
    %v1236 = vunpack.c.l.b16 %v1203
    %v1237 = vunpack.c.l.b16 %v1207
    %v1238 = vunpack.c.l.b16 %v1211
    %v1239 = vunpack.c.l.b16 %v1215
    %v1240 = vunpack.c.l.b16 %v1219
    %v1241 = vunpack.c.l.b16 %v1223
    %v1242 = vpack.c.b16 %v1227, %v1226
    %v1243 = vpack.c.b16 %v1229, %v1228
    %v1244 = vpack.c.b16 %v1231, %v1230
    %v1245 = vpack.c.b16 %v1233, %v1232
    %v1246 = vpack.c.b16 %v1235, %v1234
    %v1247 = vpack.c.b16 %v1237, %v1236
    %v1248 = vpack.c.b16 %v1239, %v1238
    %v1249 = vpack.c.b16 %v1241, %v1240
    %v1251 = vsel %vm490, %v1242, 0
    %v1254 = vsel %vm490, %v1243, 0
    %v1257 = vsel %vm490, %v1244, 0
    %v1260 = vsel %vm490, %v1245, 0
    %v1263 = vsel %vm490, %v1246, 0
    %v1266 = vsel %vm490, %v1247, 0
    %v1269 = vsel %vm490, %v1248, 0
    %v1272 = vsel %vm490, %v1249, 0
    %v1275 = vsel %vm599, %v1225, 0
    %1277 = vmatprep.subr.bf16.mxu0 0
    %1278 = vmatpush1.bf16.msra.mxu0 %v1275
    %1279 = vmatprep.subr.bf16.mxu0 0
    %1280 = vmatpush1.bf16.msra.mxu0 0
    %1281 = vmatprep.subr.bf16.mxu0 0
    %1282 = vmatpush1.bf16.msra.mxu0 0
    %1283 = vmatprep.subr.bf16.mxu0 0
    %1284 = vmatpush1.bf16.msra.mxu0 0
    %1285 = vmatprep.subr.bf16.mxu0 0
    %1286 = vmatpush1.bf16.msra.mxu0 0
    %1287 = vmatprep.subr.bf16.mxu0 0
    %1288 = vmatpush1.bf16.msra.mxu0 0
    %1289 = vmatprep.subr.bf16.mxu0 0
    %1290 = vmatpush1.bf16.msra.mxu0 0
    %1291 = vmatprep.subr.bf16.mxu0 0
    %1292 = vmatpush1.bf16.msra.mxu0 0
    %1293 = vmatprep.subr.bf16.mxu0 0
    %1294 = vmatpush1.bf16.msra.mxu0 0
    %1295 = vmatprep.subr.bf16.mxu0 0
    %1296 = vmatpush1.bf16.msra.mxu0 0
    %1297 = vmatprep.subr.bf16.mxu0 0
    %1298 = vmatpush1.bf16.msra.mxu0 0
    %1299 = vmatprep.subr.bf16.mxu0 0
    %1300 = vmatpush1.bf16.msra.mxu0 0
    %1301 = vmatprep.subr.bf16.mxu0 0
    %1302 = vmatpush1.bf16.msra.mxu0 0
    %1303 = vmatprep.subr.bf16.mxu0 0
    %1304 = vmatpush1.bf16.msra.mxu0 0
    %1305 = vmatprep.subr.bf16.mxu0 0
    %1306 = vmatpush1.bf16.msra.mxu0 0
    %1307 = vmatprep.subr.bf16.mxu0 0
    %1308 = vmatpush1.bf16.msra.mxu0 0
    %1309 = vmatprep.mubr.bf16.mxu0 0
    %1310 = vmatmul.mubr.bf16.gmra.mrb[0].mxu0 %v1251
    %v1311 = vpop.f32.mrb[0].mxu0
    %v1312 = vadd.f32 0.0, %v1311
    %v1313 = vpop.f32.mrb[0].mxu0
    %v1314 = vpop.f32.mrb[0].mxu0
    %v1315 = vadd.f32 0.0, %v1314
    %v1316 = vpop.f32.mrb[0].mxu0
    %1317 = vmatprep.mubr.bf16.mxu0 0
    %1318 = vmatmul.mubr.bf16.gmra.mrb[0].mxu0 %v1254
    %v1319 = vpop.f32.mrb[0].mxu0
    %v1320 = vadd.f32 0.0, %v1319
    %v1321 = vpop.f32.mrb[0].mxu0
    %v1322 = vpop.f32.mrb[0].mxu0
    %v1323 = vadd.f32 0.0, %v1322
    %v1324 = vpop.f32.mrb[0].mxu0
    %1325 = vmatprep.mubr.bf16.mxu0 0
    %1326 = vmatmul.mubr.bf16.gmra.mrb[0].mxu0 %v1257
    %v1327 = vpop.f32.mrb[0].mxu0
    %v1328 = vadd.f32 0.0, %v1327
    %v1329 = vpop.f32.mrb[0].mxu0
    %v1330 = vpop.f32.mrb[0].mxu0
    %v1331 = vadd.f32 0.0, %v1330
    %v1332 = vpop.f32.mrb[0].mxu0
    %1333 = vmatprep.mubr.bf16.mxu0 0
    %1334 = vmatmul.mubr.bf16.gmra.mrb[0].mxu0 %v1260
    %v1335 = vpop.f32.mrb[0].mxu0
    %v1336 = vadd.f32 0.0, %v1335
    %v1337 = vpop.f32.mrb[0].mxu0
    %v1338 = vpop.f32.mrb[0].mxu0
    %v1339 = vadd.f32 0.0, %v1338
    %v1340 = vpop.f32.mrb[0].mxu0
    %1341 = vmatprep.mubr.bf16.mxu0 0
    %1342 = vmatmul.mubr.bf16.gmra.mrb[0].mxu0 %v1263
    %v1343 = vpop.f32.mrb[0].mxu0
    %v1344 = vadd.f32 0.0, %v1343
    %v1345 = vpop.f32.mrb[0].mxu0
    %v1346 = vpop.f32.mrb[0].mxu0
    %v1347 = vadd.f32 0.0, %v1346
    %v1348 = vpop.f32.mrb[0].mxu0
    %1349 = vmatprep.mubr.bf16.mxu0 0
    %1350 = vmatmul.mubr.bf16.gmra.mrb[0].mxu0 %v1266
    %v1351 = vpop.f32.mrb[0].mxu0
    %v1352 = vadd.f32 0.0, %v1351
    %v1353 = vpop.f32.mrb[0].mxu0
    %v1354 = vpop.f32.mrb[0].mxu0
    %v1355 = vadd.f32 0.0, %v1354
    %v1356 = vpop.f32.mrb[0].mxu0
    %1357 = vmatprep.mubr.bf16.mxu0 0
    %1358 = vmatmul.mubr.bf16.gmra.mrb[0].mxu0 %v1269
    %v1359 = vpop.f32.mrb[0].mxu0
    %v1360 = vadd.f32 0.0, %v1359
    %v1361 = vpop.f32.mrb[0].mxu0
    %v1362 = vpop.f32.mrb[0].mxu0
    %v1363 = vadd.f32 0.0, %v1362
    %v1364 = vpop.f32.mrb[0].mxu0
    %1365 = vmatprep.mubr.bf16.mxu0 0
    %1366 = vmatmul.mubr.bf16.gmra.mrb[0].mxu0 %v1272
    %v1367 = vpop.f32.mrb[0].mxu0
    %v1368 = vadd.f32 0.0, %v1367
    %v1369 = vpop.f32.mrb[0].mxu0
    %v1370 = vpop.f32.mrb[0].mxu0
    %v1371 = vadd.f32 0.0, %v1370
    %v1372 = vpop.f32.mrb[0].mxu0
    %1373 = vdwg.mxu0
    %v1374 = vadd.f32 %v1141, %v1312
    %v1375 = vadd.f32 %v1142, %v1315
    %v1376 = vadd.f32 %v1143, %v1320
    %v1377 = vadd.f32 %v1144, %v1323
    %v1378 = vadd.f32 %v1145, %v1328
    %v1379 = vadd.f32 %v1146, %v1331
    %v1380 = vadd.f32 %v1147, %v1336
    %v1381 = vadd.f32 %v1148, %v1339
    %v1382 = vadd.f32 %v1149, %v1344
    %v1383 = vadd.f32 %v1150, %v1347
    %v1384 = vadd.f32 %v1151, %v1352
    %v1385 = vadd.f32 %v1152, %v1355
    %v1386 = vadd.f32 %v1153, %v1360
    %v1387 = vadd.f32 %v1154, %v1363
    %v1388 = vadd.f32 %v1155, %v1368
    %v1389 = vadd.f32 %v1156, %v1371
    %s1390 = scalar_lea.vmem [#allocation2], 8
    %v1391 = vld [vmem:[%s1390] sm:$0xff]
    %v1392 = vld [vmem:[%s1390 + $0x8] sm:$0xff]
    %v1393 = vld [vmem:[%s1390 + $0x10] sm:$0xff]
    %v1394 = vld [vmem:[%s1390 + $0x18] sm:$0xff]
    %v1395 = vld [vmem:[%s1390 + $0x20] sm:$0xff]
    %v1396 = vld [vmem:[%s1390 + $0x28] sm:$0xff]
    %v1397 = vld [vmem:[%s1390 + $0x30] sm:$0xff]
    %v1398 = vld [vmem:[%s1390 + $0x38] sm:$0xff]
    %v1399 = vld [vmem:[%s1390 + $0x50] sm:$0xff]
    %v1400 = vld [vmem:[%s1390 + $0x58] sm:$0xff]
    %v1401 = vld [vmem:[%s1390 + $0x60] sm:$0xff]
    %v1402 = vld [vmem:[%s1390 + $0x68] sm:$0xff]
    %v1403 = vld [vmem:[%s1390 + $0x70] sm:$0xff]
    %v1404 = vld [vmem:[%s1390 + $0x78] sm:$0xff]
    %v1405 = vld [vmem:[%s1390 + $0x80] sm:$0xff]
    %v1406 = vld [vmem:[%s1390 + $0x88] sm:$0xff]
    %s1407 = scalar_lea.vmem %s2, 12
    %v1408 = vld [vmem:[%s1407] sm:$0xf]
    %v1425 = vunpack.c.l.b16 %v1391
    %v1426 = vunpack.c.l.b16 %v1392
    %v1427 = vunpack.c.l.b16 %v1393
    %v1428 = vunpack.c.l.b16 %v1394
    %v1429 = vunpack.c.l.b16 %v1395
    %v1430 = vunpack.c.l.b16 %v1396
    %v1431 = vunpack.c.l.b16 %v1397
    %v1432 = vunpack.c.l.b16 %v1398
    %v1433 = vunpack.c.l.b16 %v1399
    %v1434 = vunpack.c.l.b16 %v1400
    %v1435 = vunpack.c.l.b16 %v1401
    %v1436 = vunpack.c.l.b16 %v1402
    %v1437 = vunpack.c.l.b16 %v1403
    %v1438 = vunpack.c.l.b16 %v1404
    %v1439 = vunpack.c.l.b16 %v1405
    %v1440 = vunpack.c.l.b16 %v1406
    %v1441 = vpack.c.b16 %v1426, %v1425
    %v1442 = vpack.c.b16 %v1428, %v1427
    %v1443 = vpack.c.b16 %v1430, %v1429
    %v1444 = vpack.c.b16 %v1432, %v1431
    %v1445 = vpack.c.b16 %v1434, %v1433
    %v1446 = vpack.c.b16 %v1436, %v1435
    %v1447 = vpack.c.b16 %v1438, %v1437
    %v1448 = vpack.c.b16 %v1440, %v1439
    %v1450 = vsel %vm490, %v1441, 0
    %v1453 = vsel %vm490, %v1442, 0
    %v1456 = vsel %vm490, %v1443, 0
    %v1459 = vsel %vm490, %v1444, 0
    %v1462 = vsel %vm490, %v1445, 0
    %v1465 = vsel %vm490, %v1446, 0
    %v1468 = vsel %vm490, %v1447, 0
    %v1471 = vsel %vm490, %v1448, 0
    %v1474 = vsel %vm599, %v1408, 0
    %1476 = vmatprep.subr.bf16.mxu0 0
    %1477 = vmatpush1.bf16.msra.mxu0 %v1474
    %1478 = vmatprep.subr.bf16.mxu0 0
    %1479 = vmatpush1.bf16.msra.mxu0 0
    %1480 = vmatprep.subr.bf16.mxu0 0
    %1481 = vmatpush1.bf16.msra.mxu0 0
    %1482 = vmatprep.subr.bf16.mxu0 0
    %1483 = vmatpush1.bf16.msra.mxu0 0
    %1484 = vmatprep.subr.bf16.mxu0 0
    %1485 = vmatpush1.bf16.msra.mxu0 0
    %1486 = vmatprep.subr.bf16.mxu0 0
    %1487 = vmatpush1.bf16.msra.mxu0 0
    %1488 = vmatprep.subr.bf16.mxu0 0
    %1489 = vmatpush1.bf16.msra.mxu0 0
    %1490 = vmatprep.subr.bf16.mxu0 0
    %1491 = vmatpush1.bf16.msra.mxu0 0
    %1492 = vmatprep.subr.bf16.mxu0 0
    %1493 = vmatpush1.bf16.msra.mxu0 0
    %1494 = vmatprep.subr.bf16.mxu0 0
    %1495 = vmatpush1.bf16.msra.mxu0 0
    %1496 = vmatprep.subr.bf16.mxu0 0
    %1497 = vmatpush1.bf16.msra.mxu0 0
    %1498 = vmatprep.subr.bf16.mxu0 0
    %1499 = vmatpush1.bf16.msra.mxu0 0
    %1500 = vmatprep.subr.bf16.mxu0 0
    %1501 = vmatpush1.bf16.msra.mxu0 0
    %1502 = vmatprep.subr.bf16.mxu0 0
    %1503 = vmatpush1.bf16.msra.mxu0 0
    %1504 = vmatprep.subr.bf16.mxu0 0
    %1505 = vmatpush1.bf16.msra.mxu0 0
    %1506 = vmatprep.subr.bf16.mxu0 0
    %1507 = vmatpush1.bf16.msra.mxu0 0
    %1508 = vmatprep.mubr.bf16.mxu0 0
    %1509 = vmatmul.mubr.bf16.gmra.mrb[0].mxu0 %v1450
    %v1510 = vpop.f32.mrb[0].mxu0
    %v1511 = vadd.f32 0.0, %v1510
    %v1512 = vpop.f32.mrb[0].mxu0
    %v1513 = vpop.f32.mrb[0].mxu0
    %v1514 = vadd.f32 0.0, %v1513
    %v1515 = vpop.f32.mrb[0].mxu0
    %1516 = vmatprep.mubr.bf16.mxu0 0
    %1517 = vmatmul.mubr.bf16.gmra.mrb[0].mxu0 %v1453
    %v1518 = vpop.f32.mrb[0].mxu0
    %v1519 = vadd.f32 0.0, %v1518
    %v1520 = vpop.f32.mrb[0].mxu0
    %v1521 = vpop.f32.mrb[0].mxu0
    %v1522 = vadd.f32 0.0, %v1521
    %v1523 = vpop.f32.mrb[0].mxu0
    %1524 = vmatprep.mubr.bf16.mxu0 0
    %1525 = vmatmul.mubr.bf16.gmra.mrb[0].mxu0 %v1456
    %v1526 = vpop.f32.mrb[0].mxu0
    %v1527 = vadd.f32 0.0, %v1526
    %v1528 = vpop.f32.mrb[0].mxu0
    %v1529 = vpop.f32.mrb[0].mxu0
    %v1530 = vadd.f32 0.0, %v1529
    %v1531 = vpop.f32.mrb[0].mxu0
    %1532 = vmatprep.mubr.bf16.mxu0 0
    %1533 = vmatmul.mubr.bf16.gmra.mrb[0].mxu0 %v1459
    %v1534 = vpop.f32.mrb[0].mxu0
    %v1535 = vadd.f32 0.0, %v1534
    %v1536 = vpop.f32.mrb[0].mxu0
    %v1537 = vpop.f32.mrb[0].mxu0
    %v1538 = vadd.f32 0.0, %v1537
    %v1539 = vpop.f32.mrb[0].mxu0
    %1540 = vmatprep.mubr.bf16.mxu0 0
    %1541 = vmatmul.mubr.bf16.gmra.mrb[0].mxu0 %v1462
    %v1542 = vpop.f32.mrb[0].mxu0
    %v1543 = vadd.f32 0.0, %v1542
    %v1544 = vpop.f32.mrb[0].mxu0
    %v1545 = vpop.f32.mrb[0].mxu0
    %v1546 = vadd.f32 0.0, %v1545
    %v1547 = vpop.f32.mrb[0].mxu0
    %1548 = vmatprep.mubr.bf16.mxu0 0
    %1549 = vmatmul.mubr.bf16.gmra.mrb[0].mxu0 %v1465
    %v1550 = vpop.f32.mrb[0].mxu0
    %v1551 = vadd.f32 0.0, %v1550
    %v1552 = vpop.f32.mrb[0].mxu0
    %v1553 = vpop.f32.mrb[0].mxu0
    %v1554 = vadd.f32 0.0, %v1553
    %v1555 = vpop.f32.mrb[0].mxu0
    %1556 = vmatprep.mubr.bf16.mxu0 0
    %1557 = vmatmul.mubr.bf16.gmra.mrb[0].mxu0 %v1468
    %v1558 = vpop.f32.mrb[0].mxu0
    %v1559 = vadd.f32 0.0, %v1558
    %v1560 = vpop.f32.mrb[0].mxu0
    %v1561 = vpop.f32.mrb[0].mxu0
    %v1562 = vadd.f32 0.0, %v1561
    %v1563 = vpop.f32.mrb[0].mxu0
    %1564 = vmatprep.mubr.bf16.mxu0 0
    %1565 = vmatmul.mubr.bf16.gmra.mrb[0].mxu0 %v1471
    %v1566 = vpop.f32.mrb[0].mxu0
    %v1567 = vadd.f32 0.0, %v1566
    %v1568 = vpop.f32.mrb[0].mxu0
    %v1569 = vpop.f32.mrb[0].mxu0
    %v1570 = vadd.f32 0.0, %v1569
    %v1571 = vpop.f32.mrb[0].mxu0
    %1572 = vdwg.mxu0
    %v1573 = vadd.f32 %v1374, %v1511
    %v1574 = vadd.f32 %v1375, %v1514
    %v1575 = vadd.f32 %v1376, %v1519
    %v1576 = vadd.f32 %v1377, %v1522
    %v1577 = vadd.f32 %v1378, %v1527
    %v1578 = vadd.f32 %v1379, %v1530
    %v1579 = vadd.f32 %v1380, %v1535
    %v1580 = vadd.f32 %v1381, %v1538
    %v1581 = vadd.f32 %v1382, %v1543
    %v1582 = vadd.f32 %v1383, %v1546
    %v1583 = vadd.f32 %v1384, %v1551
    %v1584 = vadd.f32 %v1385, %v1554
    %v1585 = vadd.f32 %v1386, %v1559
    %v1586 = vadd.f32 %v1387, %v1562
    %v1587 = vadd.f32 %v1388, %v1567
    %v1588 = vadd.f32 %v1389, %v1570
    %v1589 = vunpack.c.h.b16 %v1391
    %v1590 = vunpack.c.h.b16 %v1392
    %v1591 = vunpack.c.h.b16 %v1393
    %v1592 = vunpack.c.h.b16 %v1394
    %v1593 = vunpack.c.h.b16 %v1395
    %v1594 = vunpack.c.h.b16 %v1396
    %v1595 = vunpack.c.h.b16 %v1397
    %v1596 = vunpack.c.h.b16 %v1398
    %v1597 = vunpack.c.h.b16 %v1399
    %v1598 = vunpack.c.h.b16 %v1400
    %v1599 = vunpack.c.h.b16 %v1401
    %v1600 = vunpack.c.h.b16 %v1402
    %v1601 = vunpack.c.h.b16 %v1403
    %v1602 = vunpack.c.h.b16 %v1404
    %v1603 = vunpack.c.h.b16 %v1405
    %v1604 = vunpack.c.h.b16 %v1406
    %v1605 = vpack.c.b16 %v1425, %v1425
    %v1606 = vpack.c.b16 %v1589, %v1589
    %v1607 = vpack.c.b16 %v1426, %v1426
    %v1608 = vpack.c.b16 %v1590, %v1590
    %v1609 = vpack.c.b16 %v1427, %v1427
    %v1610 = vpack.c.b16 %v1591, %v1591
    %v1611 = vpack.c.b16 %v1428, %v1428
    %v1612 = vpack.c.b16 %v1592, %v1592
    %v1613 = vpack.c.b16 %v1429, %v1429
    %v1614 = vpack.c.b16 %v1593, %v1593
    %v1615 = vpack.c.b16 %v1430, %v1430
    %v1616 = vpack.c.b16 %v1594, %v1594
    %v1617 = vpack.c.b16 %v1431, %v1431
    %v1618 = vpack.c.b16 %v1595, %v1595
    %v1619 = vpack.c.b16 %v1432, %v1432
    %v1620 = vpack.c.b16 %v1596, %v1596
    %v1621 = vpack.c.b16 %v1433, %v1433
    %v1622 = vpack.c.b16 %v1597, %v1597
    %v1623 = vpack.c.b16 %v1434, %v1434
    %v1624 = vpack.c.b16 %v1598, %v1598
    %v1625 = vpack.c.b16 %v1435, %v1435
    %v1626 = vpack.c.b16 %v1599, %v1599
    %v1627 = vpack.c.b16 %v1436, %v1436
    %v1628 = vpack.c.b16 %v1600, %v1600
    %v1629 = vpack.c.b16 %v1437, %v1437
    %v1630 = vpack.c.b16 %v1601, %v1601
    %v1631 = vpack.c.b16 %v1438, %v1438
    %v1632 = vpack.c.b16 %v1602, %v1602
    %v1633 = vpack.c.b16 %v1439, %v1439
    %v1634 = vpack.c.b16 %v1603, %v1603
    %v1635 = vpack.c.b16 %v1440, %v1440
    %v1636 = vpack.c.b16 %v1604, %v1604
    %v1638 = vshrl.u32 %v1605, 16
    %v1640 = vrot.slane %v1638, 4
    %v1641 = vshll.u32 %v1605, 16
    %v1643 = vrot.slane %v1641, 5
    %v1644 = vor.u32 %v1640, %v1643
    %v1645 = vrot.slane %v1644, 4
    %v1647 = vshll.u32 %v1606, 16
    %v1649 = vrot.slane %v1647, 5
    %v1650 = vsel %vm766, %v1645, %v1649
    %v1652 = vshrl.u32 %v1607, 16
    %v1654 = vrot.slane %v1652, 4
    %v1655 = vshll.u32 %v1607, 16
    %v1657 = vrot.slane %v1655, 5
    %v1658 = vor.u32 %v1654, %v1657
    %v1659 = vrot.slane %v1658, 4
    %v1661 = vshll.u32 %v1608, 16
    %v1663 = vrot.slane %v1661, 5
    %v1664 = vsel %vm766, %v1659, %v1663
    %v1666 = vshrl.u32 %v1609, 16
    %v1668 = vrot.slane %v1666, 4
    %v1669 = vshll.u32 %v1609, 16
    %v1671 = vrot.slane %v1669, 5
    %v1672 = vor.u32 %v1668, %v1671
    %v1673 = vrot.slane %v1672, 4
    %v1675 = vshll.u32 %v1610, 16
    %v1677 = vrot.slane %v1675, 5
    %v1678 = vsel %vm766, %v1673, %v1677
    %v1680 = vshrl.u32 %v1611, 16
    %v1682 = vrot.slane %v1680, 4
    %v1683 = vshll.u32 %v1611, 16
    %v1685 = vrot.slane %v1683, 5
    %v1686 = vor.u32 %v1682, %v1685
    %v1687 = vrot.slane %v1686, 4
    %v1689 = vshll.u32 %v1612, 16
    %v1691 = vrot.slane %v1689, 5
    %v1692 = vsel %vm766, %v1687, %v1691
    %v1694 = vshrl.u32 %v1613, 16
    %v1696 = vrot.slane %v1694, 4
    %v1697 = vshll.u32 %v1613, 16
    %v1699 = vrot.slane %v1697, 5
    %v1700 = vor.u32 %v1696, %v1699
    %v1701 = vrot.slane %v1700, 4
    %v1703 = vshll.u32 %v1614, 16
    %v1705 = vrot.slane %v1703, 5
    %v1706 = vsel %vm766, %v1701, %v1705
    %v1708 = vshrl.u32 %v1615, 16
    %v1710 = vrot.slane %v1708, 4
    %v1711 = vshll.u32 %v1615, 16
    %v1713 = vrot.slane %v1711, 5
    %v1714 = vor.u32 %v1710, %v1713
    %v1715 = vrot.slane %v1714, 4
    %v1717 = vshll.u32 %v1616, 16
    %v1719 = vrot.slane %v1717, 5
    %v1720 = vsel %vm766, %v1715, %v1719
    %v1722 = vshrl.u32 %v1617, 16
    %v1724 = vrot.slane %v1722, 4
    %v1725 = vshll.u32 %v1617, 16
    %v1727 = vrot.slane %v1725, 5
    %v1728 = vor.u32 %v1724, %v1727
    %v1729 = vrot.slane %v1728, 4
    %v1731 = vshll.u32 %v1618, 16
    %v1733 = vrot.slane %v1731, 5
    %v1734 = vsel %vm766, %v1729, %v1733
    %v1736 = vshrl.u32 %v1619, 16
    %v1738 = vrot.slane %v1736, 4
    %v1739 = vshll.u32 %v1619, 16
    %v1741 = vrot.slane %v1739, 5
    %v1742 = vor.u32 %v1738, %v1741
    %v1743 = vrot.slane %v1742, 4
    %v1745 = vshll.u32 %v1620, 16
    %v1747 = vrot.slane %v1745, 5
    %v1748 = vsel %vm766, %v1743, %v1747
    %v1750 = vshrl.u32 %v1621, 16
    %v1752 = vrot.slane %v1750, 4
    %v1753 = vshll.u32 %v1621, 16
    %v1755 = vrot.slane %v1753, 5
    %v1756 = vor.u32 %v1752, %v1755
    %v1757 = vrot.slane %v1756, 4
    %v1759 = vshll.u32 %v1622, 16
    %v1761 = vrot.slane %v1759, 5
    %v1762 = vsel %vm766, %v1757, %v1761
    %v1764 = vshrl.u32 %v1623, 16
    %v1766 = vrot.slane %v1764, 4
    %v1767 = vshll.u32 %v1623, 16
    %v1769 = vrot.slane %v1767, 5
    %v1770 = vor.u32 %v1766, %v1769
    %v1771 = vrot.slane %v1770, 4
    %v1773 = vshll.u32 %v1624, 16
    %v1775 = vrot.slane %v1773, 5
    %v1776 = vsel %vm766, %v1771, %v1775
    %v1778 = vshrl.u32 %v1625, 16
    %v1780 = vrot.slane %v1778, 4
    %v1781 = vshll.u32 %v1625, 16
    %v1783 = vrot.slane %v1781, 5
    %v1784 = vor.u32 %v1780, %v1783
    %v1785 = vrot.slane %v1784, 4
    %v1787 = vshll.u32 %v1626, 16
    %v1789 = vrot.slane %v1787, 5
    %v1790 = vsel %vm766, %v1785, %v1789
    %v1792 = vshrl.u32 %v1627, 16
    %v1794 = vrot.slane %v1792, 4
    %v1795 = vshll.u32 %v1627, 16
    %v1797 = vrot.slane %v1795, 5
    %v1798 = vor.u32 %v1794, %v1797
    %v1799 = vrot.slane %v1798, 4
    %v1801 = vshll.u32 %v1628, 16
    %v1803 = vrot.slane %v1801, 5
    %v1804 = vsel %vm766, %v1799, %v1803
    %v1806 = vshrl.u32 %v1629, 16
    %v1808 = vrot.slane %v1806, 4
    %v1809 = vshll.u32 %v1629, 16
    %v1811 = vrot.slane %v1809, 5
    %v1812 = vor.u32 %v1808, %v1811
    %v1813 = vrot.slane %v1812, 4
    %v1815 = vshll.u32 %v1630, 16
    %v1817 = vrot.slane %v1815, 5
    %v1818 = vsel %vm766, %v1813, %v1817
    %v1820 = vshrl.u32 %v1631, 16
    %v1822 = vrot.slane %v1820, 4
    %v1823 = vshll.u32 %v1631, 16
    %v1825 = vrot.slane %v1823, 5
    %v1826 = vor.u32 %v1822, %v1825
    %v1827 = vrot.slane %v1826, 4
    %v1829 = vshll.u32 %v1632, 16
    %v1831 = vrot.slane %v1829, 5
    %v1832 = vsel %vm766, %v1827, %v1831
    %v1834 = vshrl.u32 %v1633, 16
    %v1836 = vrot.slane %v1834, 4
    %v1837 = vshll.u32 %v1633, 16
    %v1839 = vrot.slane %v1837, 5
    %v1840 = vor.u32 %v1836, %v1839
    %v1841 = vrot.slane %v1840, 4
    %v1843 = vshll.u32 %v1634, 16
    %v1845 = vrot.slane %v1843, 5
    %v1846 = vsel %vm766, %v1841, %v1845
    %v1848 = vshrl.u32 %v1635, 16
    %v1850 = vrot.slane %v1848, 4
    %v1851 = vshll.u32 %v1635, 16
    %v1853 = vrot.slane %v1851, 5
    %v1854 = vor.u32 %v1850, %v1853
    %v1855 = vrot.slane %v1854, 4
    %v1857 = vshll.u32 %v1636, 16
    %v1859 = vrot.slane %v1857, 5
    %v1860 = vsel %vm766, %v1855, %v1859
    %s1861 = scalar_lea.vmem %s2, 16
    %v1862 = vld [vmem:[%s1861] sm:$0xf]
    %v1863 = vunpack.c.l.b16 %v1650
    %v1864 = vunpack.c.l.b16 %v1664
    %v1865 = vunpack.c.l.b16 %v1678
    %v1866 = vunpack.c.l.b16 %v1692
    %v1867 = vunpack.c.l.b16 %v1706
    %v1868 = vunpack.c.l.b16 %v1720
    %v1869 = vunpack.c.l.b16 %v1734
    %v1870 = vunpack.c.l.b16 %v1748
    %v1871 = vunpack.c.l.b16 %v1762
    %v1872 = vunpack.c.l.b16 %v1776
    %v1873 = vunpack.c.l.b16 %v1790
    %v1874 = vunpack.c.l.b16 %v1804
    %v1875 = vunpack.c.l.b16 %v1818
    %v1876 = vunpack.c.l.b16 %v1832
    %v1877 = vunpack.c.l.b16 %v1846
    %v1878 = vunpack.c.l.b16 %v1860
    %v1879 = vpack.c.b16 %v1864, %v1863
    %v1880 = vpack.c.b16 %v1866, %v1865
    %v1881 = vpack.c.b16 %v1868, %v1867
    %v1882 = vpack.c.b16 %v1870, %v1869
    %v1883 = vpack.c.b16 %v1872, %v1871
    %v1884 = vpack.c.b16 %v1874, %v1873
    %v1885 = vpack.c.b16 %v1876, %v1875
    %v1886 = vpack.c.b16 %v1878, %v1877
    %v1888 = vsel %vm490, %v1879, 0
    %v1891 = vsel %vm490, %v1880, 0
    %v1894 = vsel %vm490, %v1881, 0
    %v1897 = vsel %vm490, %v1882, 0
    %v1900 = vsel %vm490, %v1883, 0
    %v1903 = vsel %vm490, %v1884, 0
    %v1906 = vsel %vm490, %v1885, 0
    %v1909 = vsel %vm490, %v1886, 0
    %v1912 = vsel %vm599, %v1862, 0
    %1914 = vmatprep.subr.bf16.mxu0 0
    %1915 = vmatpush1.bf16.msra.mxu0 %v1912
    %1916 = vmatprep.subr.bf16.mxu0 0
    %1917 = vmatpush1.bf16.msra.mxu0 0
    %1918 = vmatprep.subr.bf16.mxu0 0
    %1919 = vmatpush1.bf16.msra.mxu0 0
    %1920 = vmatprep.subr.bf16.mxu0 0
    %1921 = vmatpush1.bf16.msra.mxu0 0
    %1922 = vmatprep.subr.bf16.mxu0 0
    %1923 = vmatpush1.bf16.msra.mxu0 0
    %1924 = vmatprep.subr.bf16.mxu0 0
    %1925 = vmatpush1.bf16.msra.mxu0 0
    %1926 = vmatprep.subr.bf16.mxu0 0
    %1927 = vmatpush1.bf16.msra.mxu0 0
    %1928 = vmatprep.subr.bf16.mxu0 0
    %1929 = vmatpush1.bf16.msra.mxu0 0
    %1930 = vmatprep.subr.bf16.mxu0 0
    %1931 = vmatpush1.bf16.msra.mxu0 0
    %1932 = vmatprep.subr.bf16.mxu0 0
    %1933 = vmatpush1.bf16.msra.mxu0 0
    %1934 = vmatprep.subr.bf16.mxu0 0
    %1935 = vmatpush1.bf16.msra.mxu0 0
    %1936 = vmatprep.subr.bf16.mxu0 0
    %1937 = vmatpush1.bf16.msra.mxu0 0
    %1938 = vmatprep.subr.bf16.mxu0 0
    %1939 = vmatpush1.bf16.msra.mxu0 0
    %1940 = vmatprep.subr.bf16.mxu0 0
    %1941 = vmatpush1.bf16.msra.mxu0 0
    %1942 = vmatprep.subr.bf16.mxu0 0
    %1943 = vmatpush1.bf16.msra.mxu0 0
    %1944 = vmatprep.subr.bf16.mxu0 0
    %1945 = vmatpush1.bf16.msra.mxu0 0
    %1946 = vmatprep.mubr.bf16.mxu0 0
    %1947 = vmatmul.mubr.bf16.gmra.mrb[0].mxu0 %v1888
    %v1948 = vpop.f32.mrb[0].mxu0
    %v1949 = vadd.f32 0.0, %v1948
    %v1950 = vpop.f32.mrb[0].mxu0
    %v1951 = vpop.f32.mrb[0].mxu0
    %v1952 = vadd.f32 0.0, %v1951
    %v1953 = vpop.f32.mrb[0].mxu0
    %1954 = vmatprep.mubr.bf16.mxu0 0
    %1955 = vmatmul.mubr.bf16.gmra.mrb[0].mxu0 %v1891
    %v1956 = vpop.f32.mrb[0].mxu0
    %v1957 = vadd.f32 0.0, %v1956
    %v1958 = vpop.f32.mrb[0].mxu0
    %v1959 = vpop.f32.mrb[0].mxu0
    %v1960 = vadd.f32 0.0, %v1959
    %v1961 = vpop.f32.mrb[0].mxu0
    %1962 = vmatprep.mubr.bf16.mxu0 0
    %1963 = vmatmul.mubr.bf16.gmra.mrb[0].mxu0 %v1894
    %v1964 = vpop.f32.mrb[0].mxu0
    %v1965 = vadd.f32 0.0, %v1964
    %v1966 = vpop.f32.mrb[0].mxu0
    %v1967 = vpop.f32.mrb[0].mxu0
    %v1968 = vadd.f32 0.0, %v1967
    %v1969 = vpop.f32.mrb[0].mxu0
    %1970 = vmatprep.mubr.bf16.mxu0 0
    %1971 = vmatmul.mubr.bf16.gmra.mrb[0].mxu0 %v1897
    %v1972 = vpop.f32.mrb[0].mxu0
    %v1973 = vadd.f32 0.0, %v1972
    %v1974 = vpop.f32.mrb[0].mxu0
    %v1975 = vpop.f32.mrb[0].mxu0
    %v1976 = vadd.f32 0.0, %v1975
    %v1977 = vpop.f32.mrb[0].mxu0
    %1978 = vmatprep.mubr.bf16.mxu0 0
    %1979 = vmatmul.mubr.bf16.gmra.mrb[0].mxu0 %v1900
    %v1980 = vpop.f32.mrb[0].mxu0
    %v1981 = vadd.f32 0.0, %v1980
    %v1982 = vpop.f32.mrb[0].mxu0
    %v1983 = vpop.f32.mrb[0].mxu0
    %v1984 = vadd.f32 0.0, %v1983
    %v1985 = vpop.f32.mrb[0].mxu0
    %1986 = vmatprep.mubr.bf16.mxu0 0
    %1987 = vmatmul.mubr.bf16.gmra.mrb[0].mxu0 %v1903
    %v1988 = vpop.f32.mrb[0].mxu0
    %v1989 = vadd.f32 0.0, %v1988
    %v1990 = vpop.f32.mrb[0].mxu0
    %v1991 = vpop.f32.mrb[0].mxu0
    %v1992 = vadd.f32 0.0, %v1991
    %v1993 = vpop.f32.mrb[0].mxu0
    %1994 = vmatprep.mubr.bf16.mxu0 0
    %1995 = vmatmul.mubr.bf16.gmra.mrb[0].mxu0 %v1906
    %v1996 = vpop.f32.mrb[0].mxu0
    %v1997 = vadd.f32 0.0, %v1996
    %v1998 = vpop.f32.mrb[0].mxu0
    %v1999 = vpop.f32.mrb[0].mxu0
    %v2000 = vadd.f32 0.0, %v1999
    %v2001 = vpop.f32.mrb[0].mxu0
    %2002 = vmatprep.mubr.bf16.mxu0 0
    %2003 = vmatmul.mubr.bf16.gmra.mrb[0].mxu0 %v1909
    %v2004 = vpop.f32.mrb[0].mxu0
    %v2005 = vadd.f32 0.0, %v2004
    %v2006 = vpop.f32.mrb[0].mxu0
    %v2007 = vpop.f32.mrb[0].mxu0
    %v2008 = vadd.f32 0.0, %v2007
    %v2009 = vpop.f32.mrb[0].mxu0
    %2010 = vdwg.mxu0
    %v2011 = vadd.f32 %v1573, %v1949
    %v2012 = vadd.f32 %v1574, %v1952
    %v2013 = vadd.f32 %v1575, %v1957
    %v2014 = vadd.f32 %v1576, %v1960
    %v2015 = vadd.f32 %v1577, %v1965
    %v2016 = vadd.f32 %v1578, %v1968
    %v2017 = vadd.f32 %v1579, %v1973
    %v2018 = vadd.f32 %v1580, %v1976
    %v2019 = vadd.f32 %v1581, %v1981
    %v2020 = vadd.f32 %v1582, %v1984
    %v2021 = vadd.f32 %v1583, %v1989
    %v2022 = vadd.f32 %v1584, %v1992
    %v2023 = vadd.f32 %v1585, %v1997
    %v2024 = vadd.f32 %v1586, %v2000
    %v2025 = vadd.f32 %v1587, %v2005
    %v2026 = vadd.f32 %v1588, %v2008
    %v2027 = vrot.slane %v1605, 5
    %v2028 = vrot.slane %v2027, 4
    %v2029 = vrot.slane %v1606, 5
    %v2030 = vsel %vm1159, %v2028, %v2029
    %v2031 = vrot.slane %v1607, 5
    %v2032 = vrot.slane %v2031, 4
    %v2033 = vrot.slane %v1608, 5
    %v2034 = vsel %vm1159, %v2032, %v2033
    %v2035 = vrot.slane %v1609, 5
    %v2036 = vrot.slane %v2035, 4
    %v2037 = vrot.slane %v1610, 5
    %v2038 = vsel %vm1159, %v2036, %v2037
    %v2039 = vrot.slane %v1611, 5
    %v2040 = vrot.slane %v2039, 4
    %v2041 = vrot.slane %v1612, 5
    %v2042 = vsel %vm1159, %v2040, %v2041
    %v2043 = vrot.slane %v1613, 5
    %v2044 = vrot.slane %v2043, 4
    %v2045 = vrot.slane %v1614, 5
    %v2046 = vsel %vm1159, %v2044, %v2045
    %v2047 = vrot.slane %v1615, 5
    %v2048 = vrot.slane %v2047, 4
    %v2049 = vrot.slane %v1616, 5
    %v2050 = vsel %vm1159, %v2048, %v2049
    %v2051 = vrot.slane %v1617, 5
    %v2052 = vrot.slane %v2051, 4
    %v2053 = vrot.slane %v1618, 5
    %v2054 = vsel %vm1159, %v2052, %v2053
    %v2055 = vrot.slane %v1619, 5
    %v2056 = vrot.slane %v2055, 4
    %v2057 = vrot.slane %v1620, 5
    %v2058 = vsel %vm1159, %v2056, %v2057
    %v2059 = vrot.slane %v1621, 5
    %v2060 = vrot.slane %v2059, 4
    %v2061 = vrot.slane %v1622, 5
    %v2062 = vsel %vm1159, %v2060, %v2061
    %v2063 = vrot.slane %v1623, 5
    %v2064 = vrot.slane %v2063, 4
    %v2065 = vrot.slane %v1624, 5
    %v2066 = vsel %vm1159, %v2064, %v2065
    %v2067 = vrot.slane %v1625, 5
    %v2068 = vrot.slane %v2067, 4
    %v2069 = vrot.slane %v1626, 5
    %v2070 = vsel %vm1159, %v2068, %v2069
    %v2071 = vrot.slane %v1627, 5
    %v2072 = vrot.slane %v2071, 4
    %v2073 = vrot.slane %v1628, 5
    %v2074 = vsel %vm1159, %v2072, %v2073
    %v2075 = vrot.slane %v1629, 5
    %v2076 = vrot.slane %v2075, 4
    %v2077 = vrot.slane %v1630, 5
    %v2078 = vsel %vm1159, %v2076, %v2077
    %v2079 = vrot.slane %v1631, 5
    %v2080 = vrot.slane %v2079, 4
    %v2081 = vrot.slane %v1632, 5
    %v2082 = vsel %vm1159, %v2080, %v2081
    %v2083 = vrot.slane %v1633, 5
    %v2084 = vrot.slane %v2083, 4
    %v2085 = vrot.slane %v1634, 5
    %v2086 = vsel %vm1159, %v2084, %v2085
    %v2087 = vrot.slane %v1635, 5
    %v2088 = vrot.slane %v2087, 4
    %v2089 = vrot.slane %v1636, 5
    %v2090 = vsel %vm1159, %v2088, %v2089
    %s2091 = scalar_lea.vmem %s2, 20
    %v2092 = vld [vmem:[%s2091] sm:$0xf]
    %v2093 = vunpack.c.l.b16 %v2030
    %v2094 = vunpack.c.l.b16 %v2034
    %v2095 = vunpack.c.l.b16 %v2038
    %v2096 = vunpack.c.l.b16 %v2042
    %v2097 = vunpack.c.l.b16 %v2046
    %v2098 = vunpack.c.l.b16 %v2050
    %v2099 = vunpack.c.l.b16 %v2054
    %v2100 = vunpack.c.l.b16 %v2058
    %v2101 = vunpack.c.l.b16 %v2062
    %v2102 = vunpack.c.l.b16 %v2066
    %v2103 = vunpack.c.l.b16 %v2070
    %v2104 = vunpack.c.l.b16 %v2074
    %v2105 = vunpack.c.l.b16 %v2078
    %v2106 = vunpack.c.l.b16 %v2082
    %v2107 = vunpack.c.l.b16 %v2086
    %v2108 = vunpack.c.l.b16 %v2090
    %v2109 = vpack.c.b16 %v2094, %v2093
    %v2110 = vpack.c.b16 %v2096, %v2095
    %v2111 = vpack.c.b16 %v2098, %v2097
    %v2112 = vpack.c.b16 %v2100, %v2099
    %v2113 = vpack.c.b16 %v2102, %v2101
    %v2114 = vpack.c.b16 %v2104, %v2103
    %v2115 = vpack.c.b16 %v2106, %v2105
    %v2116 = vpack.c.b16 %v2108, %v2107
    %v2118 = vsel %vm490, %v2109, 0
    %v2121 = vsel %vm490, %v2110, 0
    %v2124 = vsel %vm490, %v2111, 0
    %v2127 = vsel %vm490, %v2112, 0
    %v2130 = vsel %vm490, %v2113, 0
    %v2133 = vsel %vm490, %v2114, 0
    %v2136 = vsel %vm490, %v2115, 0
    %v2139 = vsel %vm490, %v2116, 0
    %v2142 = vsel %vm599, %v2092, 0
    %2144 = vmatprep.subr.bf16.mxu0 0
    %2145 = vmatpush1.bf16.msra.mxu0 %v2142
    %2146 = vmatprep.subr.bf16.mxu0 0
    %2147 = vmatpush1.bf16.msra.mxu0 0
    %2148 = vmatprep.subr.bf16.mxu0 0
    %2149 = vmatpush1.bf16.msra.mxu0 0
    %2150 = vmatprep.subr.bf16.mxu0 0
    %2151 = vmatpush1.bf16.msra.mxu0 0
    %2152 = vmatprep.subr.bf16.mxu0 0
    %2153 = vmatpush1.bf16.msra.mxu0 0
    %2154 = vmatprep.subr.bf16.mxu0 0
    %2155 = vmatpush1.bf16.msra.mxu0 0
    %2156 = vmatprep.subr.bf16.mxu0 0
    %2157 = vmatpush1.bf16.msra.mxu0 0
    %2158 = vmatprep.subr.bf16.mxu0 0
    %2159 = vmatpush1.bf16.msra.mxu0 0
    %2160 = vmatprep.subr.bf16.mxu0 0
    %2161 = vmatpush1.bf16.msra.mxu0 0
    %2162 = vmatprep.subr.bf16.mxu0 0
    %2163 = vmatpush1.bf16.msra.mxu0 0
    %2164 = vmatprep.subr.bf16.mxu0 0
    %2165 = vmatpush1.bf16.msra.mxu0 0
    %2166 = vmatprep.subr.bf16.mxu0 0
    %2167 = vmatpush1.bf16.msra.mxu0 0
    %2168 = vmatprep.subr.bf16.mxu0 0
    %2169 = vmatpush1.bf16.msra.mxu0 0
    %2170 = vmatprep.subr.bf16.mxu0 0
    %2171 = vmatpush1.bf16.msra.mxu0 0
    %2172 = vmatprep.subr.bf16.mxu0 0
    %2173 = vmatpush1.bf16.msra.mxu0 0
    %2174 = vmatprep.subr.bf16.mxu0 0
    %2175 = vmatpush1.bf16.msra.mxu0 0
    %2176 = vmatprep.mubr.bf16.mxu0 0
    %2177 = vmatmul.mubr.bf16.gmra.mrb[0].mxu0 %v2118
    %v2178 = vpop.f32.mrb[0].mxu0
    %v2179 = vadd.f32 0.0, %v2178
    %v2180 = vpop.f32.mrb[0].mxu0
    %v2181 = vpop.f32.mrb[0].mxu0
    %v2182 = vadd.f32 0.0, %v2181
    %v2183 = vpop.f32.mrb[0].mxu0
    %2184 = vmatprep.mubr.bf16.mxu0 0
    %2185 = vmatmul.mubr.bf16.gmra.mrb[0].mxu0 %v2121
    %v2186 = vpop.f32.mrb[0].mxu0
    %v2187 = vadd.f32 0.0, %v2186
    %v2188 = vpop.f32.mrb[0].mxu0
    %v2189 = vpop.f32.mrb[0].mxu0
    %v2190 = vadd.f32 0.0, %v2189
    %v2191 = vpop.f32.mrb[0].mxu0
    %2192 = vmatprep.mubr.bf16.mxu0 0
    %2193 = vmatmul.mubr.bf16.gmra.mrb[0].mxu0 %v2124
    %v2194 = vpop.f32.mrb[0].mxu0
    %v2195 = vadd.f32 0.0, %v2194
    %v2196 = vpop.f32.mrb[0].mxu0
    %v2197 = vpop.f32.mrb[0].mxu0
    %v2198 = vadd.f32 0.0, %v2197
    %v2199 = vpop.f32.mrb[0].mxu0
    %2200 = vmatprep.mubr.bf16.mxu0 0
    %2201 = vmatmul.mubr.bf16.gmra.mrb[0].mxu0 %v2127
    %v2202 = vpop.f32.mrb[0].mxu0
    %v2203 = vadd.f32 0.0, %v2202
    %v2204 = vpop.f32.mrb[0].mxu0
    %v2205 = vpop.f32.mrb[0].mxu0
    %v2206 = vadd.f32 0.0, %v2205
    %v2207 = vpop.f32.mrb[0].mxu0
    %2208 = vmatprep.mubr.bf16.mxu0 0
    %2209 = vmatmul.mubr.bf16.gmra.mrb[0].mxu0 %v2130
    %v2210 = vpop.f32.mrb[0].mxu0
    %v2211 = vadd.f32 0.0, %v2210
    %v2212 = vpop.f32.mrb[0].mxu0
    %v2213 = vpop.f32.mrb[0].mxu0
    %v2214 = vadd.f32 0.0, %v2213
    %v2215 = vpop.f32.mrb[0].mxu0
    %2216 = vmatprep.mubr.bf16.mxu0 0
    %2217 = vmatmul.mubr.bf16.gmra.mrb[0].mxu0 %v2133
    %v2218 = vpop.f32.mrb[0].mxu0
    %v2219 = vadd.f32 0.0, %v2218
    %v2220 = vpop.f32.mrb[0].mxu0
    %v2221 = vpop.f32.mrb[0].mxu0
    %v2222 = vadd.f32 0.0, %v2221
    %v2223 = vpop.f32.mrb[0].mxu0
    %2224 = vmatprep.mubr.bf16.mxu0 0
    %2225 = vmatmul.mubr.bf16.gmra.mrb[0].mxu0 %v2136
    %v2226 = vpop.f32.mrb[0].mxu0
    %v2227 = vadd.f32 0.0, %v2226
    %v2228 = vpop.f32.mrb[0].mxu0
    %v2229 = vpop.f32.mrb[0].mxu0
    %v2230 = vadd.f32 0.0, %v2229
    %v2231 = vpop.f32.mrb[0].mxu0
    %2232 = vmatprep.mubr.bf16.mxu0 0
    %2233 = vmatmul.mubr.bf16.gmra.mrb[0].mxu0 %v2139
    %v2234 = vpop.f32.mrb[0].mxu0
    %v2235 = vadd.f32 0.0, %v2234
    %v2236 = vpop.f32.mrb[0].mxu0
    %v2237 = vpop.f32.mrb[0].mxu0
    %v2238 = vadd.f32 0.0, %v2237
    %v2239 = vpop.f32.mrb[0].mxu0
    %2240 = vdwg.mxu0
    %v2241 = vadd.f32 %v2011, %v2179
    %v2242 = vadd.f32 %v2012, %v2182
    %v2243 = vadd.f32 %v2013, %v2187
    %v2244 = vadd.f32 %v2014, %v2190
    %v2245 = vadd.f32 %v2015, %v2195
    %v2246 = vadd.f32 %v2016, %v2198
    %v2247 = vadd.f32 %v2017, %v2203
    %v2248 = vadd.f32 %v2018, %v2206
    %v2249 = vadd.f32 %v2019, %v2211
    %v2250 = vadd.f32 %v2020, %v2214
    %v2251 = vadd.f32 %v2021, %v2219
    %v2252 = vadd.f32 %v2022, %v2222
    %v2253 = vadd.f32 %v2023, %v2227
    %v2254 = vadd.f32 %v2024, %v2230
    %v2255 = vadd.f32 %v2025, %v2235
    %v2256 = vadd.f32 %v2026, %v2238
    %s2257 = scalar_lea.vmem [#allocation2], 16
    %v2258 = vld [vmem:[%s2257] sm:$0xff]
    %v2259 = vld [vmem:[%s2257 + $0x8] sm:$0xff]
    %v2260 = vld [vmem:[%s2257 + $0x10] sm:$0xff]
    %v2261 = vld [vmem:[%s2257 + $0x18] sm:$0xff]
    %v2262 = vld [vmem:[%s2257 + $0x20] sm:$0xff]
    %v2263 = vld [vmem:[%s2257 + $0x28] sm:$0xff]
    %v2264 = vld [vmem:[%s2257 + $0x30] sm:$0xff]
    %v2265 = vld [vmem:[%s2257 + $0x38] sm:$0xff]
    %v2266 = vld [vmem:[%s2257 + $0x50] sm:$0xff]
    %v2267 = vld [vmem:[%s2257 + $0x58] sm:$0xff]
    %v2268 = vld [vmem:[%s2257 + $0x60] sm:$0xff]
    %v2269 = vld [vmem:[%s2257 + $0x68] sm:$0xff]
    %v2270 = vld [vmem:[%s2257 + $0x70] sm:$0xff]
    %v2271 = vld [vmem:[%s2257 + $0x78] sm:$0xff]
    %v2272 = vld [vmem:[%s2257 + $0x80] sm:$0xff]
    %v2273 = vld [vmem:[%s2257 + $0x88] sm:$0xff]
    %s2274 = scalar_lea.vmem %s2, 24
    %v2275 = vld [vmem:[%s2274] sm:$0xf]
    %v2292 = vunpack.c.l.b16 %v2258
    %v2293 = vunpack.c.l.b16 %v2259
    %v2294 = vunpack.c.l.b16 %v2260
    %v2295 = vunpack.c.l.b16 %v2261
    %v2296 = vunpack.c.l.b16 %v2262
    %v2297 = vunpack.c.l.b16 %v2263
    %v2298 = vunpack.c.l.b16 %v2264
    %v2299 = vunpack.c.l.b16 %v2265
    %v2300 = vunpack.c.l.b16 %v2266
    %v2301 = vunpack.c.l.b16 %v2267
    %v2302 = vunpack.c.l.b16 %v2268
    %v2303 = vunpack.c.l.b16 %v2269
    %v2304 = vunpack.c.l.b16 %v2270
    %v2305 = vunpack.c.l.b16 %v2271
    %v2306 = vunpack.c.l.b16 %v2272
    %v2307 = vunpack.c.l.b16 %v2273
    %v2308 = vpack.c.b16 %v2293, %v2292
    %v2309 = vpack.c.b16 %v2295, %v2294
    %v2310 = vpack.c.b16 %v2297, %v2296
    %v2311 = vpack.c.b16 %v2299, %v2298
    %v2312 = vpack.c.b16 %v2301, %v2300
    %v2313 = vpack.c.b16 %v2303, %v2302
    %v2314 = vpack.c.b16 %v2305, %v2304
    %v2315 = vpack.c.b16 %v2307, %v2306
    %v2317 = vsel %vm490, %v2308, 0
    %v2320 = vsel %vm490, %v2309, 0
    %v2323 = vsel %vm490, %v2310, 0
    %v2326 = vsel %vm490, %v2311, 0
    %v2329 = vsel %vm490, %v2312, 0
    %v2332 = vsel %vm490, %v2313, 0
    %v2335 = vsel %vm490, %v2314, 0
    %v2338 = vsel %vm490, %v2315, 0
    %v2341 = vsel %vm599, %v2275, 0
    %2343 = vmatprep.subr.bf16.mxu0 0
    %2344 = vmatpush1.bf16.msra.mxu0 %v2341
    %2345 = vmatprep.subr.bf16.mxu0 0
    %2346 = vmatpush1.bf16.msra.mxu0 0
    %2347 = vmatprep.subr.bf16.mxu0 0
    %2348 = vmatpush1.bf16.msra.mxu0 0
    %2349 = vmatprep.subr.bf16.mxu0 0
    %2350 = vmatpush1.bf16.msra.mxu0 0
    %2351 = vmatprep.subr.bf16.mxu0 0
    %2352 = vmatpush1.bf16.msra.mxu0 0
    %2353 = vmatprep.subr.bf16.mxu0 0
    %2354 = vmatpush1.bf16.msra.mxu0 0
    %2355 = vmatprep.subr.bf16.mxu0 0
    %2356 = vmatpush1.bf16.msra.mxu0 0
    %2357 = vmatprep.subr.bf16.mxu0 0
    %2358 = vmatpush1.bf16.msra.mxu0 0
    %2359 = vmatprep.subr.bf16.mxu0 0
    %2360 = vmatpush1.bf16.msra.mxu0 0
    %2361 = vmatprep.subr.bf16.mxu0 0
    %2362 = vmatpush1.bf16.msra.mxu0 0
    %2363 = vmatprep.subr.bf16.mxu0 0
    %2364 = vmatpush1.bf16.msra.mxu0 0
    %2365 = vmatprep.subr.bf16.mxu0 0
    %2366 = vmatpush1.bf16.msra.mxu0 0
    %2367 = vmatprep.subr.bf16.mxu0 0
    %2368 = vmatpush1.bf16.msra.mxu0 0
    %2369 = vmatprep.subr.bf16.mxu0 0
    %2370 = vmatpush1.bf16.msra.mxu0 0
    %2371 = vmatprep.subr.bf16.mxu0 0
    %2372 = vmatpush1.bf16.msra.mxu0 0
    %2373 = vmatprep.subr.bf16.mxu0 0
    %2374 = vmatpush1.bf16.msra.mxu0 0
    %2375 = vmatprep.mubr.bf16.mxu0 0
    %2376 = vmatmul.mubr.bf16.gmra.mrb[0].mxu0 %v2317
    %v2377 = vpop.f32.mrb[0].mxu0
    %v2378 = vadd.f32 0.0, %v2377
    %v2379 = vpop.f32.mrb[0].mxu0
    %v2380 = vpop.f32.mrb[0].mxu0
    %v2381 = vadd.f32 0.0, %v2380
    %v2382 = vpop.f32.mrb[0].mxu0
    %2383 = vmatprep.mubr.bf16.mxu0 0
    %2384 = vmatmul.mubr.bf16.gmra.mrb[0].mxu0 %v2320
    %v2385 = vpop.f32.mrb[0].mxu0
    %v2386 = vadd.f32 0.0, %v2385
    %v2387 = vpop.f32.mrb[0].mxu0
    %v2388 = vpop.f32.mrb[0].mxu0
    %v2389 = vadd.f32 0.0, %v2388
    %v2390 = vpop.f32.mrb[0].mxu0
    %2391 = vmatprep.mubr.bf16.mxu0 0
    %2392 = vmatmul.mubr.bf16.gmra.mrb[0].mxu0 %v2323
    %v2393 = vpop.f32.mrb[0].mxu0
    %v2394 = vadd.f32 0.0, %v2393
    %v2395 = vpop.f32.mrb[0].mxu0
    %v2396 = vpop.f32.mrb[0].mxu0
    %v2397 = vadd.f32 0.0, %v2396
    %v2398 = vpop.f32.mrb[0].mxu0
    %2399 = vmatprep.mubr.bf16.mxu0 0
    %2400 = vmatmul.mubr.bf16.gmra.mrb[0].mxu0 %v2326
    %v2401 = vpop.f32.mrb[0].mxu0
    %v2402 = vadd.f32 0.0, %v2401
    %v2403 = vpop.f32.mrb[0].mxu0
    %v2404 = vpop.f32.mrb[0].mxu0
    %v2405 = vadd.f32 0.0, %v2404
    %v2406 = vpop.f32.mrb[0].mxu0
    %2407 = vmatprep.mubr.bf16.mxu0 0
    %2408 = vmatmul.mubr.bf16.gmra.mrb[0].mxu0 %v2329
    %v2409 = vpop.f32.mrb[0].mxu0
    %v2410 = vadd.f32 0.0, %v2409
    %v2411 = vpop.f32.mrb[0].mxu0
    %v2412 = vpop.f32.mrb[0].mxu0
    %v2413 = vadd.f32 0.0, %v2412
    %v2414 = vpop.f32.mrb[0].mxu0
    %2415 = vmatprep.mubr.bf16.mxu0 0
    %2416 = vmatmul.mubr.bf16.gmra.mrb[0].mxu0 %v2332
    %v2417 = vpop.f32.mrb[0].mxu0
    %v2418 = vadd.f32 0.0, %v2417
    %v2419 = vpop.f32.mrb[0].mxu0
    %v2420 = vpop.f32.mrb[0].mxu0
    %v2421 = vadd.f32 0.0, %v2420
    %v2422 = vpop.f32.mrb[0].mxu0
    %2423 = vmatprep.mubr.bf16.mxu0 0
    %2424 = vmatmul.mubr.bf16.gmra.mrb[0].mxu0 %v2335
    %v2425 = vpop.f32.mrb[0].mxu0
    %v2426 = vadd.f32 0.0, %v2425
    %v2427 = vpop.f32.mrb[0].mxu0
    %v2428 = vpop.f32.mrb[0].mxu0
    %v2429 = vadd.f32 0.0, %v2428
    %v2430 = vpop.f32.mrb[0].mxu0
    %2431 = vmatprep.mubr.bf16.mxu0 0
    %2432 = vmatmul.mubr.bf16.gmra.mrb[0].mxu0 %v2338
    %v2433 = vpop.f32.mrb[0].mxu0
    %v2434 = vadd.f32 0.0, %v2433
    %v2435 = vpop.f32.mrb[0].mxu0
    %v2436 = vpop.f32.mrb[0].mxu0
    %v2437 = vadd.f32 0.0, %v2436
    %v2438 = vpop.f32.mrb[0].mxu0
    %2439 = vdwg.mxu0
    %v2440 = vadd.f32 %v2241, %v2378
    %v2441 = vadd.f32 %v2242, %v2381
    %v2442 = vadd.f32 %v2243, %v2386
    %v2443 = vadd.f32 %v2244, %v2389
    %v2444 = vadd.f32 %v2245, %v2394
    %v2445 = vadd.f32 %v2246, %v2397
    %v2446 = vadd.f32 %v2247, %v2402
    %v2447 = vadd.f32 %v2248, %v2405
    %v2448 = vadd.f32 %v2249, %v2410
    %v2449 = vadd.f32 %v2250, %v2413
    %v2450 = vadd.f32 %v2251, %v2418
    %v2451 = vadd.f32 %v2252, %v2421
    %v2452 = vadd.f32 %v2253, %v2426
    %v2453 = vadd.f32 %v2254, %v2429
    %v2454 = vadd.f32 %v2255, %v2434
    %v2455 = vadd.f32 %v2256, %v2437
    %v2456 = vunpack.c.h.b16 %v2258
    %v2457 = vunpack.c.h.b16 %v2259
    %v2458 = vunpack.c.h.b16 %v2260
    %v2459 = vunpack.c.h.b16 %v2261
    %v2460 = vunpack.c.h.b16 %v2262
    %v2461 = vunpack.c.h.b16 %v2263
    %v2462 = vunpack.c.h.b16 %v2264
    %v2463 = vunpack.c.h.b16 %v2265
    %v2464 = vunpack.c.h.b16 %v2266
    %v2465 = vunpack.c.h.b16 %v2267
    %v2466 = vunpack.c.h.b16 %v2268
    %v2467 = vunpack.c.h.b16 %v2269
    %v2468 = vunpack.c.h.b16 %v2270
    %v2469 = vunpack.c.h.b16 %v2271
    %v2470 = vunpack.c.h.b16 %v2272
    %v2471 = vunpack.c.h.b16 %v2273
    %v2472 = vpack.c.b16 %v2292, %v2292
    %v2473 = vpack.c.b16 %v2456, %v2456
    %v2474 = vpack.c.b16 %v2293, %v2293
    %v2475 = vpack.c.b16 %v2457, %v2457
    %v2476 = vpack.c.b16 %v2294, %v2294
    %v2477 = vpack.c.b16 %v2458, %v2458
    %v2478 = vpack.c.b16 %v2295, %v2295
    %v2479 = vpack.c.b16 %v2459, %v2459
    %v2480 = vpack.c.b16 %v2296, %v2296
    %v2481 = vpack.c.b16 %v2460, %v2460
    %v2482 = vpack.c.b16 %v2297, %v2297
    %v2483 = vpack.c.b16 %v2461, %v2461
    %v2484 = vpack.c.b16 %v2298, %v2298
    %v2485 = vpack.c.b16 %v2462, %v2462
    %v2486 = vpack.c.b16 %v2299, %v2299
    %v2487 = vpack.c.b16 %v2463, %v2463
    %v2488 = vpack.c.b16 %v2300, %v2300
    %v2489 = vpack.c.b16 %v2464, %v2464
    %v2490 = vpack.c.b16 %v2301, %v2301
    %v2491 = vpack.c.b16 %v2465, %v2465
    %v2492 = vpack.c.b16 %v2302, %v2302
    %v2493 = vpack.c.b16 %v2466, %v2466
    %v2494 = vpack.c.b16 %v2303, %v2303
    %v2495 = vpack.c.b16 %v2467, %v2467
    %v2496 = vpack.c.b16 %v2304, %v2304
    %v2497 = vpack.c.b16 %v2468, %v2468
    %v2498 = vpack.c.b16 %v2305, %v2305
    %v2499 = vpack.c.b16 %v2469, %v2469
    %v2500 = vpack.c.b16 %v2306, %v2306
    %v2501 = vpack.c.b16 %v2470, %v2470
    %v2502 = vpack.c.b16 %v2307, %v2307
    %v2503 = vpack.c.b16 %v2471, %v2471
    %v2505 = vshrl.u32 %v2472, 16
    %v2507 = vrot.slane %v2505, 4
    %v2508 = vshll.u32 %v2472, 16
    %v2510 = vrot.slane %v2508, 5
    %v2511 = vor.u32 %v2507, %v2510
    %v2512 = vrot.slane %v2511, 4
    %v2514 = vshll.u32 %v2473, 16
    %v2516 = vrot.slane %v2514, 5
    %v2517 = vsel %vm766, %v2512, %v2516
    %v2519 = vshrl.u32 %v2474, 16
    %v2521 = vrot.slane %v2519, 4
    %v2522 = vshll.u32 %v2474, 16
    %v2524 = vrot.slane %v2522, 5
    %v2525 = vor.u32 %v2521, %v2524
    %v2526 = vrot.slane %v2525, 4
    %v2528 = vshll.u32 %v2475, 16
    %v2530 = vrot.slane %v2528, 5
    %v2531 = vsel %vm766, %v2526, %v2530
    %v2533 = vshrl.u32 %v2476, 16
    %v2535 = vrot.slane %v2533, 4
    %v2536 = vshll.u32 %v2476, 16
    %v2538 = vrot.slane %v2536, 5
    %v2539 = vor.u32 %v2535, %v2538
    %v2540 = vrot.slane %v2539, 4
    %v2542 = vshll.u32 %v2477, 16
    %v2544 = vrot.slane %v2542, 5
    %v2545 = vsel %vm766, %v2540, %v2544
    %v2547 = vshrl.u32 %v2478, 16
    %v2549 = vrot.slane %v2547, 4
    %v2550 = vshll.u32 %v2478, 16
    %v2552 = vrot.slane %v2550, 5
    %v2553 = vor.u32 %v2549, %v2552
    %v2554 = vrot.slane %v2553, 4
    %v2556 = vshll.u32 %v2479, 16
    %v2558 = vrot.slane %v2556, 5
    %v2559 = vsel %vm766, %v2554, %v2558
    %v2561 = vshrl.u32 %v2480, 16
    %v2563 = vrot.slane %v2561, 4
    %v2564 = vshll.u32 %v2480, 16
    %v2566 = vrot.slane %v2564, 5
    %v2567 = vor.u32 %v2563, %v2566
    %v2568 = vrot.slane %v2567, 4
    %v2570 = vshll.u32 %v2481, 16
    %v2572 = vrot.slane %v2570, 5
    %v2573 = vsel %vm766, %v2568, %v2572
    %v2575 = vshrl.u32 %v2482, 16
    %v2577 = vrot.slane %v2575, 4
    %v2578 = vshll.u32 %v2482, 16
    %v2580 = vrot.slane %v2578, 5
    %v2581 = vor.u32 %v2577, %v2580
    %v2582 = vrot.slane %v2581, 4
    %v2584 = vshll.u32 %v2483, 16
    %v2586 = vrot.slane %v2584, 5
    %v2587 = vsel %vm766, %v2582, %v2586
    %v2589 = vshrl.u32 %v2484, 16
    %v2591 = vrot.slane %v2589, 4
    %v2592 = vshll.u32 %v2484, 16
    %v2594 = vrot.slane %v2592, 5
    %v2595 = vor.u32 %v2591, %v2594
    %v2596 = vrot.slane %v2595, 4
    %v2598 = vshll.u32 %v2485, 16
    %v2600 = vrot.slane %v2598, 5
    %v2601 = vsel %vm766, %v2596, %v2600
    %v2603 = vshrl.u32 %v2486, 16
    %v2605 = vrot.slane %v2603, 4
    %v2606 = vshll.u32 %v2486, 16
    %v2608 = vrot.slane %v2606, 5
    %v2609 = vor.u32 %v2605, %v2608
    %v2610 = vrot.slane %v2609, 4
    %v2612 = vshll.u32 %v2487, 16
    %v2614 = vrot.slane %v2612, 5
    %v2615 = vsel %vm766, %v2610, %v2614
    %v2617 = vshrl.u32 %v2488, 16
    %v2619 = vrot.slane %v2617, 4
    %v2620 = vshll.u32 %v2488, 16
    %v2622 = vrot.slane %v2620, 5
    %v2623 = vor.u32 %v2619, %v2622
    %v2624 = vrot.slane %v2623, 4
    %v2626 = vshll.u32 %v2489, 16
    %v2628 = vrot.slane %v2626, 5
    %v2629 = vsel %vm766, %v2624, %v2628
    %v2631 = vshrl.u32 %v2490, 16
    %v2633 = vrot.slane %v2631, 4
    %v2634 = vshll.u32 %v2490, 16
    %v2636 = vrot.slane %v2634, 5
    %v2637 = vor.u32 %v2633, %v2636
    %v2638 = vrot.slane %v2637, 4
    %v2640 = vshll.u32 %v2491, 16
    %v2642 = vrot.slane %v2640, 5
    %v2643 = vsel %vm766, %v2638, %v2642
    %v2645 = vshrl.u32 %v2492, 16
    %v2647 = vrot.slane %v2645, 4
    %v2648 = vshll.u32 %v2492, 16
    %v2650 = vrot.slane %v2648, 5
    %v2651 = vor.u32 %v2647, %v2650
    %v2652 = vrot.slane %v2651, 4
    %v2654 = vshll.u32 %v2493, 16
    %v2656 = vrot.slane %v2654, 5
    %v2657 = vsel %vm766, %v2652, %v2656
    %v2659 = vshrl.u32 %v2494, 16
    %v2661 = vrot.slane %v2659, 4
    %v2662 = vshll.u32 %v2494, 16
    %v2664 = vrot.slane %v2662, 5
    %v2665 = vor.u32 %v2661, %v2664
    %v2666 = vrot.slane %v2665, 4
    %v2668 = vshll.u32 %v2495, 16
    %v2670 = vrot.slane %v2668, 5
    %v2671 = vsel %vm766, %v2666, %v2670
    %v2673 = vshrl.u32 %v2496, 16
    %v2675 = vrot.slane %v2673, 4
    %v2676 = vshll.u32 %v2496, 16
    %v2678 = vrot.slane %v2676, 5
    %v2679 = vor.u32 %v2675, %v2678
    %v2680 = vrot.slane %v2679, 4
    %v2682 = vshll.u32 %v2497, 16
    %v2684 = vrot.slane %v2682, 5
    %v2685 = vsel %vm766, %v2680, %v2684
    %v2687 = vshrl.u32 %v2498, 16
    %v2689 = vrot.slane %v2687, 4
    %v2690 = vshll.u32 %v2498, 16
    %v2692 = vrot.slane %v2690, 5
    %v2693 = vor.u32 %v2689, %v2692
    %v2694 = vrot.slane %v2693, 4
    %v2696 = vshll.u32 %v2499, 16
    %v2698 = vrot.slane %v2696, 5
    %v2699 = vsel %vm766, %v2694, %v2698
    %v2701 = vshrl.u32 %v2500, 16
    %v2703 = vrot.slane %v2701, 4
    %v2704 = vshll.u32 %v2500, 16
    %v2706 = vrot.slane %v2704, 5
    %v2707 = vor.u32 %v2703, %v2706
    %v2708 = vrot.slane %v2707, 4
    %v2710 = vshll.u32 %v2501, 16
    %v2712 = vrot.slane %v2710, 5
    %v2713 = vsel %vm766, %v2708, %v2712
    %v2715 = vshrl.u32 %v2502, 16
    %v2717 = vrot.slane %v2715, 4
    %v2718 = vshll.u32 %v2502, 16
    %v2720 = vrot.slane %v2718, 5
    %v2721 = vor.u32 %v2717, %v2720
    %v2722 = vrot.slane %v2721, 4
    %v2724 = vshll.u32 %v2503, 16
    %v2726 = vrot.slane %v2724, 5
    %v2727 = vsel %vm766, %v2722, %v2726
    %s2728 = scalar_lea.vmem %s2, 28
    %v2729 = vld [vmem:[%s2728] sm:$0xf]
    %v2730 = vunpack.c.l.b16 %v2517
    %v2731 = vunpack.c.l.b16 %v2531
    %v2732 = vunpack.c.l.b16 %v2545
    %v2733 = vunpack.c.l.b16 %v2559
    %v2734 = vunpack.c.l.b16 %v2573
    %v2735 = vunpack.c.l.b16 %v2587
    %v2736 = vunpack.c.l.b16 %v2601
    %v2737 = vunpack.c.l.b16 %v2615
    %v2738 = vunpack.c.l.b16 %v2629
    %v2739 = vunpack.c.l.b16 %v2643
    %v2740 = vunpack.c.l.b16 %v2657
    %v2741 = vunpack.c.l.b16 %v2671
    %v2742 = vunpack.c.l.b16 %v2685
    %v2743 = vunpack.c.l.b16 %v2699
    %v2744 = vunpack.c.l.b16 %v2713
    %v2745 = vunpack.c.l.b16 %v2727
    %v2746 = vpack.c.b16 %v2731, %v2730
    %v2747 = vpack.c.b16 %v2733, %v2732
    %v2748 = vpack.c.b16 %v2735, %v2734
    %v2749 = vpack.c.b16 %v2737, %v2736
    %v2750 = vpack.c.b16 %v2739, %v2738
    %v2751 = vpack.c.b16 %v2741, %v2740
    %v2752 = vpack.c.b16 %v2743, %v2742
    %v2753 = vpack.c.b16 %v2745, %v2744
    %v2755 = vsel %vm490, %v2746, 0
    %v2758 = vsel %vm490, %v2747, 0
    %v2761 = vsel %vm490, %v2748, 0
    %v2764 = vsel %vm490, %v2749, 0
    %v2767 = vsel %vm490, %v2750, 0
    %v2770 = vsel %vm490, %v2751, 0
    %v2773 = vsel %vm490, %v2752, 0
    %v2776 = vsel %vm490, %v2753, 0
    %v2779 = vsel %vm599, %v2729, 0
    %2781 = vmatprep.subr.bf16.mxu0 0
    %2782 = vmatpush1.bf16.msra.mxu0 %v2779
    %2783 = vmatprep.subr.bf16.mxu0 0
    %2784 = vmatpush1.bf16.msra.mxu0 0
    %2785 = vmatprep.subr.bf16.mxu0 0
    %2786 = vmatpush1.bf16.msra.mxu0 0
    %2787 = vmatprep.subr.bf16.mxu0 0
    %2788 = vmatpush1.bf16.msra.mxu0 0
    %2789 = vmatprep.subr.bf16.mxu0 0
    %2790 = vmatpush1.bf16.msra.mxu0 0
    %2791 = vmatprep.subr.bf16.mxu0 0
    %2792 = vmatpush1.bf16.msra.mxu0 0
    %2793 = vmatprep.subr.bf16.mxu0 0
    %2794 = vmatpush1.bf16.msra.mxu0 0
    %2795 = vmatprep.subr.bf16.mxu0 0
    %2796 = vmatpush1.bf16.msra.mxu0 0
    %2797 = vmatprep.subr.bf16.mxu0 0
    %2798 = vmatpush1.bf16.msra.mxu0 0
    %2799 = vmatprep.subr.bf16.mxu0 0
    %2800 = vmatpush1.bf16.msra.mxu0 0
    %2801 = vmatprep.subr.bf16.mxu0 0
    %2802 = vmatpush1.bf16.msra.mxu0 0
    %2803 = vmatprep.subr.bf16.mxu0 0
    %2804 = vmatpush1.bf16.msra.mxu0 0
    %2805 = vmatprep.subr.bf16.mxu0 0
    %2806 = vmatpush1.bf16.msra.mxu0 0
    %2807 = vmatprep.subr.bf16.mxu0 0
    %2808 = vmatpush1.bf16.msra.mxu0 0
    %2809 = vmatprep.subr.bf16.mxu0 0
    %2810 = vmatpush1.bf16.msra.mxu0 0
    %2811 = vmatprep.subr.bf16.mxu0 0
    %2812 = vmatpush1.bf16.msra.mxu0 0
    %2813 = vmatprep.mubr.bf16.mxu0 0
    %2814 = vmatmul.mubr.bf16.gmra.mrb[0].mxu0 %v2755
    %v2815 = vpop.f32.mrb[0].mxu0
    %v2816 = vadd.f32 0.0, %v2815
    %v2817 = vpop.f32.mrb[0].mxu0
    %v2818 = vpop.f32.mrb[0].mxu0
    %v2819 = vadd.f32 0.0, %v2818
    %v2820 = vpop.f32.mrb[0].mxu0
    %2821 = vmatprep.mubr.bf16.mxu0 0
    %2822 = vmatmul.mubr.bf16.gmra.mrb[0].mxu0 %v2758
    %v2823 = vpop.f32.mrb[0].mxu0
    %v2824 = vadd.f32 0.0, %v2823
    %v2825 = vpop.f32.mrb[0].mxu0
    %v2826 = vpop.f32.mrb[0].mxu0
    %v2827 = vadd.f32 0.0, %v2826
    %v2828 = vpop.f32.mrb[0].mxu0
    %2829 = vmatprep.mubr.bf16.mxu0 0
    %2830 = vmatmul.mubr.bf16.gmra.mrb[0].mxu0 %v2761
    %v2831 = vpop.f32.mrb[0].mxu0
    %v2832 = vadd.f32 0.0, %v2831
    %v2833 = vpop.f32.mrb[0].mxu0
    %v2834 = vpop.f32.mrb[0].mxu0
    %v2835 = vadd.f32 0.0, %v2834
    %v2836 = vpop.f32.mrb[0].mxu0
    %2837 = vmatprep.mubr.bf16.mxu0 0
    %2838 = vmatmul.mubr.bf16.gmra.mrb[0].mxu0 %v2764
    %v2839 = vpop.f32.mrb[0].mxu0
    %v2840 = vadd.f32 0.0, %v2839
    %v2841 = vpop.f32.mrb[0].mxu0
    %v2842 = vpop.f32.mrb[0].mxu0
    %v2843 = vadd.f32 0.0, %v2842
    %v2844 = vpop.f32.mrb[0].mxu0
    %2845 = vmatprep.mubr.bf16.mxu0 0
    %2846 = vmatmul.mubr.bf16.gmra.mrb[0].mxu0 %v2767
    %v2847 = vpop.f32.mrb[0].mxu0
    %v2848 = vadd.f32 0.0, %v2847
    %v2849 = vpop.f32.mrb[0].mxu0
    %v2850 = vpop.f32.mrb[0].mxu0
    %v2851 = vadd.f32 0.0, %v2850
    %v2852 = vpop.f32.mrb[0].mxu0
    %2853 = vmatprep.mubr.bf16.mxu0 0
    %2854 = vmatmul.mubr.bf16.gmra.mrb[0].mxu0 %v2770
    %v2855 = vpop.f32.mrb[0].mxu0
    %v2856 = vadd.f32 0.0, %v2855
    %v2857 = vpop.f32.mrb[0].mxu0
    %v2858 = vpop.f32.mrb[0].mxu0
    %v2859 = vadd.f32 0.0, %v2858
    %v2860 = vpop.f32.mrb[0].mxu0
    %2861 = vmatprep.mubr.bf16.mxu0 0
    %2862 = vmatmul.mubr.bf16.gmra.mrb[0].mxu0 %v2773
    %v2863 = vpop.f32.mrb[0].mxu0
    %v2864 = vadd.f32 0.0, %v2863
    %v2865 = vpop.f32.mrb[0].mxu0
    %v2866 = vpop.f32.mrb[0].mxu0
    %v2867 = vadd.f32 0.0, %v2866
    %v2868 = vpop.f32.mrb[0].mxu0
    %2869 = vmatprep.mubr.bf16.mxu0 0
    %2870 = vmatmul.mubr.bf16.gmra.mrb[0].mxu0 %v2776
    %v2871 = vpop.f32.mrb[0].mxu0
    %v2872 = vadd.f32 0.0, %v2871
    %v2873 = vpop.f32.mrb[0].mxu0
    %v2874 = vpop.f32.mrb[0].mxu0
    %v2875 = vadd.f32 0.0, %v2874
    %v2876 = vpop.f32.mrb[0].mxu0
    %2877 = vdwg.mxu0
    %v2878 = vadd.f32 %v2440, %v2816
    %v2879 = vadd.f32 %v2441, %v2819
    %v2880 = vadd.f32 %v2442, %v2824
    %v2881 = vadd.f32 %v2443, %v2827
    %v2882 = vadd.f32 %v2444, %v2832
    %v2883 = vadd.f32 %v2445, %v2835
    %v2884 = vadd.f32 %v2446, %v2840
    %v2885 = vadd.f32 %v2447, %v2843
    %v2886 = vadd.f32 %v2448, %v2848
    %v2887 = vadd.f32 %v2449, %v2851
    %v2888 = vadd.f32 %v2450, %v2856
    %v2889 = vadd.f32 %v2451, %v2859
    %v2890 = vadd.f32 %v2452, %v2864
    %v2891 = vadd.f32 %v2453, %v2867
    %v2892 = vadd.f32 %v2454, %v2872
    %v2893 = vadd.f32 %v2455, %v2875
    %v2894 = vrot.slane %v2472, 5
    %v2895 = vrot.slane %v2894, 4
    %v2896 = vrot.slane %v2473, 5
    %v2897 = vsel %vm1159, %v2895, %v2896
    %v2898 = vrot.slane %v2474, 5
    %v2899 = vrot.slane %v2898, 4
    %v2900 = vrot.slane %v2475, 5
    %v2901 = vsel %vm1159, %v2899, %v2900
    %v2902 = vrot.slane %v2476, 5
    %v2903 = vrot.slane %v2902, 4
    %v2904 = vrot.slane %v2477, 5
    %v2905 = vsel %vm1159, %v2903, %v2904
    %v2906 = vrot.slane %v2478, 5
    %v2907 = vrot.slane %v2906, 4
    %v2908 = vrot.slane %v2479, 5
    %v2909 = vsel %vm1159, %v2907, %v2908
    %v2910 = vrot.slane %v2480, 5
    %v2911 = vrot.slane %v2910, 4
    %v2912 = vrot.slane %v2481, 5
    %v2913 = vsel %vm1159, %v2911, %v2912
    %v2914 = vrot.slane %v2482, 5
    %v2915 = vrot.slane %v2914, 4
    %v2916 = vrot.slane %v2483, 5
    %v2917 = vsel %vm1159, %v2915, %v2916
    %v2918 = vrot.slane %v2484, 5
    %v2919 = vrot.slane %v2918, 4
    %v2920 = vrot.slane %v2485, 5
    %v2921 = vsel %vm1159, %v2919, %v2920
    %v2922 = vrot.slane %v2486, 5
    %v2923 = vrot.slane %v2922, 4
    %v2924 = vrot.slane %v2487, 5
    %v2925 = vsel %vm1159, %v2923, %v2924
    %v2926 = vrot.slane %v2488, 5
    %v2927 = vrot.slane %v2926, 4
    %v2928 = vrot.slane %v2489, 5
    %v2929 = vsel %vm1159, %v2927, %v2928
    %v2930 = vrot.slane %v2490, 5
    %v2931 = vrot.slane %v2930, 4
    %v2932 = vrot.slane %v2491, 5
    %v2933 = vsel %vm1159, %v2931, %v2932
    %v2934 = vrot.slane %v2492, 5
    %v2935 = vrot.slane %v2934, 4
    %v2936 = vrot.slane %v2493, 5
    %v2937 = vsel %vm1159, %v2935, %v2936
    %v2938 = vrot.slane %v2494, 5
    %v2939 = vrot.slane %v2938, 4
    %v2940 = vrot.slane %v2495, 5
    %v2941 = vsel %vm1159, %v2939, %v2940
    %v2942 = vrot.slane %v2496, 5
    %v2943 = vrot.slane %v2942, 4
    %v2944 = vrot.slane %v2497, 5
    %v2945 = vsel %vm1159, %v2943, %v2944
    %v2946 = vrot.slane %v2498, 5
    %v2947 = vrot.slane %v2946, 4
    %v2948 = vrot.slane %v2499, 5
    %v2949 = vsel %vm1159, %v2947, %v2948
    %v2950 = vrot.slane %v2500, 5
    %v2951 = vrot.slane %v2950, 4
    %v2952 = vrot.slane %v2501, 5
    %v2953 = vsel %vm1159, %v2951, %v2952
    %v2954 = vrot.slane %v2502, 5
    %v2955 = vrot.slane %v2954, 4
    %v2956 = vrot.slane %v2503, 5
    %v2957 = vsel %vm1159, %v2955, %v2956
    %s2958 = scalar_lea.vmem %s2, 32
    %v2959 = vld [vmem:[%s2958] sm:$0xf]
    %v2960 = vunpack.c.l.b16 %v2897
    %v2961 = vunpack.c.l.b16 %v2901
    %v2962 = vunpack.c.l.b16 %v2905
    %v2963 = vunpack.c.l.b16 %v2909
    %v2964 = vunpack.c.l.b16 %v2913
    %v2965 = vunpack.c.l.b16 %v2917
    %v2966 = vunpack.c.l.b16 %v2921
    %v2967 = vunpack.c.l.b16 %v2925
    %v2968 = vunpack.c.l.b16 %v2929
    %v2969 = vunpack.c.l.b16 %v2933
    %v2970 = vunpack.c.l.b16 %v2937
    %v2971 = vunpack.c.l.b16 %v2941
    %v2972 = vunpack.c.l.b16 %v2945
    %v2973 = vunpack.c.l.b16 %v2949
    %v2974 = vunpack.c.l.b16 %v2953
    %v2975 = vunpack.c.l.b16 %v2957
    %v2976 = vpack.c.b16 %v2961, %v2960
    %v2977 = vpack.c.b16 %v2963, %v2962
    %v2978 = vpack.c.b16 %v2965, %v2964
    %v2979 = vpack.c.b16 %v2967, %v2966
    %v2980 = vpack.c.b16 %v2969, %v2968
    %v2981 = vpack.c.b16 %v2971, %v2970
    %v2982 = vpack.c.b16 %v2973, %v2972
    %v2983 = vpack.c.b16 %v2975, %v2974
    %v2985 = vsel %vm490, %v2976, 0
    %v2988 = vsel %vm490, %v2977, 0
    %v2991 = vsel %vm490, %v2978, 0
    %v2994 = vsel %vm490, %v2979, 0
    %v2997 = vsel %vm490, %v2980, 0
    %v3000 = vsel %vm490, %v2981, 0
    %v3003 = vsel %vm490, %v2982, 0
    %v3006 = vsel %vm490, %v2983, 0
    %v3009 = vsel %vm599, %v2959, 0
    %3011 = vmatprep.subr.bf16.mxu0 0
    %3012 = vmatpush1.bf16.msra.mxu0 %v3009
    %3013 = vmatprep.subr.bf16.mxu0 0
    %3014 = vmatpush1.bf16.msra.mxu0 0
    %3015 = vmatprep.subr.bf16.mxu0 0
    %3016 = vmatpush1.bf16.msra.mxu0 0
    %3017 = vmatprep.subr.bf16.mxu0 0
    %3018 = vmatpush1.bf16.msra.mxu0 0
    %3019 = vmatprep.subr.bf16.mxu0 0
    %3020 = vmatpush1.bf16.msra.mxu0 0
    %3021 = vmatprep.subr.bf16.mxu0 0
    %3022 = vmatpush1.bf16.msra.mxu0 0
    %3023 = vmatprep.subr.bf16.mxu0 0
    %3024 = vmatpush1.bf16.msra.mxu0 0
    %3025 = vmatprep.subr.bf16.mxu0 0
    %3026 = vmatpush1.bf16.msra.mxu0 0
    %3027 = vmatprep.subr.bf16.mxu0 0
    %3028 = vmatpush1.bf16.msra.mxu0 0
    %3029 = vmatprep.subr.bf16.mxu0 0
    %3030 = vmatpush1.bf16.msra.mxu0 0
    %3031 = vmatprep.subr.bf16.mxu0 0
    %3032 = vmatpush1.bf16.msra.mxu0 0
    %3033 = vmatprep.subr.bf16.mxu0 0
    %3034 = vmatpush1.bf16.msra.mxu0 0
    %3035 = vmatprep.subr.bf16.mxu0 0
    %3036 = vmatpush1.bf16.msra.mxu0 0
    %3037 = vmatprep.subr.bf16.mxu0 0
    %3038 = vmatpush1.bf16.msra.mxu0 0
    %3039 = vmatprep.subr.bf16.mxu0 0
    %3040 = vmatpush1.bf16.msra.mxu0 0
    %3041 = vmatprep.subr.bf16.mxu0 0
    %3042 = vmatpush1.bf16.msra.mxu0 0
    %3043 = vmatprep.mubr.bf16.mxu0 0
    %3044 = vmatmul.mubr.bf16.gmra.mrb[0].mxu0 %v2985
    %v3045 = vpop.f32.mrb[0].mxu0
    %v3046 = vadd.f32 0.0, %v3045
    %v3047 = vpop.f32.mrb[0].mxu0
    %v3048 = vpop.f32.mrb[0].mxu0
    %v3049 = vadd.f32 0.0, %v3048
    %v3050 = vpop.f32.mrb[0].mxu0
    %3051 = vmatprep.mubr.bf16.mxu0 0
    %3052 = vmatmul.mubr.bf16.gmra.mrb[0].mxu0 %v2988
    %v3053 = vpop.f32.mrb[0].mxu0
    %v3054 = vadd.f32 0.0, %v3053
    %v3055 = vpop.f32.mrb[0].mxu0
    %v3056 = vpop.f32.mrb[0].mxu0
    %v3057 = vadd.f32 0.0, %v3056
    %v3058 = vpop.f32.mrb[0].mxu0
    %3059 = vmatprep.mubr.bf16.mxu0 0
    %3060 = vmatmul.mubr.bf16.gmra.mrb[0].mxu0 %v2991
    %v3061 = vpop.f32.mrb[0].mxu0
    %v3062 = vadd.f32 0.0, %v3061
    %v3063 = vpop.f32.mrb[0].mxu0
    %v3064 = vpop.f32.mrb[0].mxu0
    %v3065 = vadd.f32 0.0, %v3064
    %v3066 = vpop.f32.mrb[0].mxu0
    %3067 = vmatprep.mubr.bf16.mxu0 0
    %3068 = vmatmul.mubr.bf16.gmra.mrb[0].mxu0 %v2994
    %v3069 = vpop.f32.mrb[0].mxu0
    %v3070 = vadd.f32 0.0, %v3069
    %v3071 = vpop.f32.mrb[0].mxu0
    %v3072 = vpop.f32.mrb[0].mxu0
    %v3073 = vadd.f32 0.0, %v3072
    %v3074 = vpop.f32.mrb[0].mxu0
    %3075 = vmatprep.mubr.bf16.mxu0 0
    %3076 = vmatmul.mubr.bf16.gmra.mrb[0].mxu0 %v2997
    %v3077 = vpop.f32.mrb[0].mxu0
    %v3078 = vadd.f32 0.0, %v3077
    %v3079 = vpop.f32.mrb[0].mxu0
    %v3080 = vpop.f32.mrb[0].mxu0
    %v3081 = vadd.f32 0.0, %v3080
    %v3082 = vpop.f32.mrb[0].mxu0
    %3083 = vmatprep.mubr.bf16.mxu0 0
    %3084 = vmatmul.mubr.bf16.gmra.mrb[0].mxu0 %v3000
    %v3085 = vpop.f32.mrb[0].mxu0
    %v3086 = vadd.f32 0.0, %v3085
    %v3087 = vpop.f32.mrb[0].mxu0
    %v3088 = vpop.f32.mrb[0].mxu0
    %v3089 = vadd.f32 0.0, %v3088
    %v3090 = vpop.f32.mrb[0].mxu0
    %3091 = vmatprep.mubr.bf16.mxu0 0
    %3092 = vmatmul.mubr.bf16.gmra.mrb[0].mxu0 %v3003
    %v3093 = vpop.f32.mrb[0].mxu0
    %v3094 = vadd.f32 0.0, %v3093
    %v3095 = vpop.f32.mrb[0].mxu0
    %v3096 = vpop.f32.mrb[0].mxu0
    %v3097 = vadd.f32 0.0, %v3096
    %v3098 = vpop.f32.mrb[0].mxu0
    %3099 = vmatprep.mubr.bf16.mxu0 0
    %3100 = vmatmul.mubr.bf16.gmra.mrb[0].mxu0 %v3006
    %v3101 = vpop.f32.mrb[0].mxu0
    %v3102 = vadd.f32 0.0, %v3101
    %v3103 = vpop.f32.mrb[0].mxu0
    %v3104 = vpop.f32.mrb[0].mxu0
    %v3105 = vadd.f32 0.0, %v3104
    %v3106 = vpop.f32.mrb[0].mxu0
    %3107 = vdwg.mxu0
    %v3108 = vadd.f32 %v2878, %v3046
    %v3109 = vadd.f32 %v2879, %v3049
    %v3110 = vadd.f32 %v2880, %v3054
    %v3111 = vadd.f32 %v2881, %v3057
    %v3112 = vadd.f32 %v2882, %v3062
    %v3113 = vadd.f32 %v2883, %v3065
    %v3114 = vadd.f32 %v2884, %v3070
    %v3115 = vadd.f32 %v2885, %v3073
    %v3116 = vadd.f32 %v2886, %v3078
    %v3117 = vadd.f32 %v2887, %v3081
    %v3118 = vadd.f32 %v2888, %v3086
    %v3119 = vadd.f32 %v2889, %v3089
    %v3120 = vadd.f32 %v2890, %v3094
    %v3121 = vadd.f32 %v2891, %v3097
    %v3122 = vadd.f32 %v2892, %v3102
    %v3123 = vadd.f32 %v2893, %v3105
    %v3124 = vmax.f32 %v3108, 0.0
    %v3125 = vmax.f32 %v3109, 0.0
    %v3126 = vmax.f32 %v3110, 0.0
    %v3127 = vmax.f32 %v3111, 0.0
    %v3128 = vmax.f32 %v3112, 0.0
    %v3129 = vmax.f32 %v3113, 0.0
    %v3130 = vmax.f32 %v3114, 0.0
    %v3131 = vmax.f32 %v3115, 0.0
    %v3132 = vmax.f32 %v3116, 0.0
    %v3133 = vmax.f32 %v3117, 0.0
    %v3134 = vmax.f32 %v3118, 0.0
    %v3135 = vmax.f32 %v3119, 0.0
    %v3136 = vmax.f32 %v3120, 0.0
    %v3137 = vmax.f32 %v3121, 0.0
    %v3138 = vmax.f32 %v3122, 0.0
    %v3139 = vmax.f32 %v3123, 0.0
    %v3140 = vld [vmem:[%s4] sm:$0x3]
    %v3141 = vpack.c.bf16 %v3125, %v3124
    %v3142 = vpack.c.bf16 %v3127, %v3126
    %v3143 = vpack.c.bf16 %v3129, %v3128
    %v3144 = vpack.c.bf16 %v3131, %v3130
    %v3145 = vpack.c.bf16 %v3133, %v3132
    %v3146 = vpack.c.bf16 %v3135, %v3134
    %v3147 = vpack.c.bf16 %v3137, %v3136
    %v3148 = vpack.c.bf16 %v3139, %v3138
    %v3149 = vld [vmem:[%s5] sm:$0xf]
    %3151 = vset.pattern.permute.xlu0 0
    %3152 = vperm.xlu0 %3151, %v3149
    %v3153 = vpop.permute.xlu0 %3152
    %v3156 = vsel %vm490, %v3140, 0
    %v3159 = vsel %vm490, %v3141, 0
    %v3162 = vsel %vm490, %v3142, 0
    %v3165 = vsel %vm490, %v3143, 0
    %v3168 = vsel %vm490, %v3144, 0
    %v3171 = vsel %vm490, %v3145, 0
    %v3174 = vsel %vm490, %v3146, 0
    %v3177 = vsel %vm490, %v3147, 0
    %v3180 = vsel %vm490, %v3148, 0
    %3182 = vmatprep.subr.bf16.mxu0 0
    %3183 = vmatpush1.bf16.xpose.msra.mxu0 %v3159
    %3184 = vmatprep.subr.bf16.mxu0 0
    %3185 = vmatpush1.bf16.xpose.msra.mxu0 %v3162
    %3186 = vmatprep.subr.bf16.mxu0 0
    %3187 = vmatpush1.bf16.xpose.msra.mxu0 %v3165
    %3188 = vmatprep.subr.bf16.mxu0 0
    %3189 = vmatpush1.bf16.xpose.msra.mxu0 %v3168
    %3190 = vmatprep.subr.bf16.mxu0 0
    %3191 = vmatpush1.bf16.xpose.msra.mxu0 %v3171
    %3192 = vmatprep.subr.bf16.mxu0 0
    %3193 = vmatpush1.bf16.xpose.msra.mxu0 %v3174
    %3194 = vmatprep.subr.bf16.mxu0 0
    %3195 = vmatpush1.bf16.xpose.msra.mxu0 %v3177
    %3196 = vmatprep.subr.bf16.mxu0 0
    %3197 = vmatpush1.bf16.xpose.msra.mxu0 %v3180
    %3198 = vmatprep.subr.bf16.mxu0 0
    %3199 = vmatpush1.bf16.xpose.msra.mxu0 0
    %3200 = vmatprep.subr.bf16.mxu0 0
    %3201 = vmatpush1.bf16.xpose.msra.mxu0 0
    %3202 = vmatprep.subr.bf16.mxu0 0
    %3203 = vmatpush1.bf16.xpose.msra.mxu0 0
    %3204 = vmatprep.subr.bf16.mxu0 0
    %3205 = vmatpush1.bf16.xpose.msra.mxu0 0
    %3206 = vmatprep.subr.bf16.mxu0 0
    %3207 = vmatpush1.bf16.xpose.msra.mxu0 0
    %3208 = vmatprep.subr.bf16.mxu0 0
    %3209 = vmatpush1.bf16.xpose.msra.mxu0 0
    %3210 = vmatprep.subr.bf16.mxu0 0
    %3211 = vmatpush1.bf16.xpose.msra.mxu0 0
    %3212 = vmatprep.subr.bf16.mxu0 0
    %3213 = vmatpush1.bf16.xpose.msra.mxu0 0
    %3214 = vmatprep.mubr.bf16.mxu0 0
    %3215 = vmatmul.mubr.bf16.gmra.mrb[0].mxu0 %v3156
    %v3216 = vpop.f32.mrb[0].mxu0
    %v3217 = vadd.f32 %v3153, %v3216
    %v3218 = vpop.f32.mrb[0].mxu0
    %v3219 = vpop.f32.mrb[0].mxu0
    %v3220 = vpop.f32.mrb[0].mxu0
    %3221 = vdwg.mxu0
    %v3222 = vld [vmem:[%s6] sm:$0x3]
    %v3223 = vunpack.c.l.bf16 %v3222
    %v3224 = vadd.f32 %v3217, %v3223
    %v3225 = vpack.c.bf16 %v3224, %v3224
    %3226 = vst [vmem:[#allocation3] sm:$0x3] %v3225
    // Predicated region
    $region30: #{tpu_custom_call.1} parent=1 // pred_check
      _
    $region31: #{tpu_custom_call.1} parent=1 // pred_check_branch
      %3228 = sbr.rel (0) target = $region33
    $region32: #{tpu_custom_call.1} parent=1 // pred_region
      %s3230 = ssub.s32 32, 32
      %3231 = vsyncadd [#allocation4], %s3230
      %s3233 = sshll.u32 [#allocation3], 4
      %s3234 = int_to_ptr.vmem [resolvable:$true] %s3233
      %3236 = dma.vmem_to_hbm [thread:$0]  %s3234, 32, %s7, [#allocation4]
    $region33: #{tpu_custom_call.1} parent=1 // pred_fallthru
      _
    // Predicated region
    $region34: #{tpu_custom_call.1} parent=1 // pred_check
      _
    $region35: #{tpu_custom_call.1} parent=1 // pred_check_branch
      %3238 = sbr.rel (0) target = $region37
    $region36: #{tpu_custom_call.1} parent=1 // pred_region
      %3239 = dma.done [#allocation4], 32
    $region37: #{tpu_custom_call.1} parent=1 // pred_fallthru
      _
    %3240 = vsyncpa [#allocation4], 1

</llo_original>
